<compile_context>
chip_gen: v7x
topology: tpu7x:2x2x1
jax: 0.10.0
libtpu: 0.0.40
codegen_flags: <defaults>
</compile_context>

<pallas_src>
import functools

import jax
import jax.numpy as jnp
from jax.experimental import pallas as pl
from jax.experimental.pallas import tpu as pltpu

# bf16 matmul inputs (f32 accumulation) hit the native MXU rate on v6e/v7x and
# halve activation/weight DMA bytes.  Set to jnp.float32 for bit-tight
# numerics against a full-f32 reference.
MATMUL_DTYPE = jnp.bfloat16


def _round_up(x, m):
    return (x + m - 1) // m * m


# ----------------------------- Pallas kernel --------------------------------
def _conv_block_kernel(p1_ref, mask_ref, w1_ref, b1_ref, w2_ref, b2_ref,
                       o_ref, hp_ref, *, H, W, neg_slope):
    """Fused WSConv2d(3x3,pad1) + LeakyReLU, twice, for one image.

    p1_ref  : (Rv, 9*Cin)    host-gathered conv1 taps (row-flat, pitch W+2)
    mask_ref: (Rv, 1)        1.0 for valid columns, 0.0 for the 2 pad columns
    w1_ref  : (9*Cin, Cmid)  conv1 weight, WS scale folded in
    b1_ref  : (1, Cmid)
    w2_ref  : (9*Cmid, Cout) conv2 weight, WS scale folded in
    b2_ref  : (1, Cout)
    o_ref   : (Rv, Cout)     row-flattened output (pad columns still present)
    hp_ref  : (Rp, Cmid)     f32 VMEM scratch: zero-padded intermediate h
    """
    Wp = W + 2
    Rv = H * Wp
    Rp = hp_ref.shape[0]
    Cmid = hp_ref.shape[1]

    # -------- conv1: single matmul over K = 9*Cin, + bias + LeakyReLU -------
    h = jnp.dot(p1_ref[...], w1_ref[...], preferred_element_type=jnp.float32)
    h = h + b1_ref[...]
    h = jnp.where(h > 0, h, neg_slope * h)
    # zero the Wp-W garbage columns per image row so the shifted reads below
    # see a correctly zero-padded intermediate activation.
    h = h * mask_ref[...]

    # Place h at padded offset Wp+1.  Zero only the halo rows (8-aligned
    # supersets; the interior rows in [lo, Wp+1) and [hi, Wp+1+Rv) are
    # overwritten by the h store right after).  Re-done every grid step since
    # the scratch persists across iterations / cores.
    lo = _round_up(Wp + 1, 8)
    hi = (Wp + 1 + Rv) // 8 * 8
    hp_ref[0:lo, :] = jnp.zeros((lo, Cmid), jnp.float32)
    hp_ref[hi:Rp, :] = jnp.zeros((Rp - hi, Cmid), jnp.float32)
    hp_ref[Wp + 1:Wp + 1 + Rv, :] = h

    # -------- conv2: gather 9 taps along lanes -> single K = 9*Cmid matmul --
    offsets = [kh * Wp + kw for kh in range(3) for kw in range(3)]
    lhs2 = jnp.concatenate([hp_ref[off:off + Rv, :] for off in offsets],
                           axis=-1).astype(w2_ref.dtype)
    y = jnp.dot(lhs2, w2_ref[...], preferred_element_type=jnp.float32)
    y = y + b2_ref[...]
    o_ref[...] = jnp.where(y > 0, y, neg_slope * y).astype(o_ref.dtype)


# ------------------------------ wrapper --------------------------------------
def conv_block_forward(x_nchw, params, neg_slope=0.2):
    """ConvBlock.forward: leaky(conv2(leaky(conv1(x)))). NCHW in / NCHW out."""
    w1, b1, s1 = params["w1"], params["b1"], params["scale1"]
    w2, b2, s2 = params["w2"], params["b2"], params["scale2"]

    N, Cin, H, W = x_nchw.shape
    Cmid = w1.shape[0]
    Cout = w2.shape[0]
    Wp = W + 2
    Rv = H * Wp                            # rows computed per image
    Rsrc = (H + 2) * Wp                    # rows of the padded, flat image
    Rp = _round_up(2 * Wp + 2 + Rv, 8)     # hp rows (covers max shifted read)

    offsets = [kh * Wp + kw for kh in range(3) for kw in range(3)]

    # ---- input: NCHW -> NHWC, spatial zero-pad, flatten rows, host-side 3x3
    # tap gather for conv1 (Cin is tiny so this is a few tens of KB).
    x_nhwc = jnp.transpose(x_nchw, (0, 2, 3, 1))
    xp = jnp.pad(x_nhwc, ((0, 0), (1, 1), (1, 1), (0, 0)))
    xf = xp.reshape(N, Rsrc, Cin)
    xf = jnp.pad(xf, ((0, 0), (0, Rp - Rsrc), (0, 0)))
    patches = jnp.concatenate([xf[:, off:off + Rv, :] for off in offsets],
                              axis=-1).astype(MATMUL_DTYPE)      # (N, Rv, 9*Cin)

    # ---- weights: fold the WS scale in, (tap, cin)-major contraction rows ---
    w1m = jnp.transpose(w1 * s1, (2, 3, 1, 0)).reshape(9 * Cin, Cmid)
    w1m = w1m.astype(MATMUL_DTYPE)
    b1r = b1.reshape(1, Cmid).astype(jnp.float32)
    w2m = jnp.transpose(w2 * s2, (2, 3, 1, 0)).reshape(9 * Cmid, Cout)
    w2m = w2m.astype(MATMUL_DTYPE)
    b2r = b2.reshape(1, Cout).astype(jnp.float32)

    # valid-column mask (period Wp: W ones, 2 zeros)
    mask = (jnp.arange(Wp) < W).astype(jnp.float32)
    mask = jnp.tile(mask, H).reshape(Rv, 1)

    kernel = functools.partial(_conv_block_kernel, H=H, W=W,
                               neg_slope=neg_slope)

    out_flat = pl.pallas_call(
        kernel,
        out_shape=jax.ShapeDtypeStruct((N, Rv, Cout), jnp.float32),
        grid_spec=pltpu.PrefetchScalarGridSpec(
            num_scalar_prefetch=0,
            grid=(N,),
            in_specs=[
                pl.BlockSpec((None, Rv, 9 * Cin), lambda n: (n, 0, 0)),
                pl.BlockSpec((Rv, 1), lambda n: (0, 0)),
                pl.BlockSpec((9 * Cin, Cmid), lambda n: (0, 0)),
                pl.BlockSpec((1, Cmid), lambda n: (0, 0)),
                pl.BlockSpec((9 * Cmid, Cout), lambda n: (0, 0)),
                pl.BlockSpec((1, Cout), lambda n: (0, 0)),
            ],
            out_specs=pl.BlockSpec((None, Rv, Cout), lambda n: (n, 0, 0)),
            scratch_shapes=[pltpu.VMEM((Rp, Cmid), jnp.float32)],
        ),
        compiler_params=pltpu.CompilerParams(
            dimension_semantics=("parallel",),   # 2 images -> both v7x cores
        ),
    )(patches, mask, w1m, b1r, w2m, b2r)

    # ---- un-flatten, drop the 2 pad columns, back to NCHW -------------------
    out = out_flat.reshape(N, H, Wp, Cout)[:, :, :W, :]
    return jnp.transpose(out, (0, 3, 1, 2))


# ------------------------- reference (pure JAX) -------------------------------
def _ref_conv_block(x, params, matmul_dtype):
    """Reference applying the same matmul-input rounding contract as the kernel
    (bf16-rounded activations/weights, f32 accumulation)."""
    def ws_conv(xin, w, b, scale):
        y = jax.lax.conv_general_dilated(
            xin.astype(matmul_dtype).astype(jnp.float32),
            (w * scale).astype(matmul_dtype).astype(jnp.float32),
            window_strides=(1, 1), padding=((1, 1), (1, 1)),
            dimension_numbers=("NCHW", "OIHW", "NCHW"),
            precision=jax.lax.Precision.HIGHEST)
        return y + b.reshape(1, -1, 1, 1)

    leaky = lambda t: jnp.where(t > 0, t, 0.2 * t)
    h = leaky(ws_conv(x, params["w1"], params["b1"], params["scale1"]))
    return leaky(ws_conv(h, params["w2"], params["b2"], params["scale2"]))


# --------------------------------- main --------------------------------------
if __name__ == "__main__":
    key = jax.random.PRNGKey(0)
    kx, kw1, kw2 = jax.random.split(key, 3)

    N, Cin, H, W = 2, 4, 16, 16
    Cout = 8
    K = 3

    x = jax.random.normal(kx, (N, Cin, H, W), dtype=jnp.float32)

    # WSConv2d init: weight ~ N(0,1), bias = 0, scale = sqrt(2/(in_ch*k^2))
    params = {
        "w1": jax.random.normal(kw1, (Cout, Cin, K, K), dtype=jnp.float32),
        "b1": jnp.zeros((Cout,), dtype=jnp.float32),
        "scale1": float((2.0 / (Cin * K * K)) ** 0.5),
        "w2": jax.random.normal(kw2, (Cout, Cout, K, K), dtype=jnp.float32),
        "b2": jnp.zeros((Cout,), dtype=jnp.float32),
        "scale2": float((2.0 / (Cout * K * K)) ** 0.5),
    }

    out = jax.block_until_ready(conv_block_forward(x, params))
    ref = jax.block_until_ready(_ref_conv_block(x, params, MATMUL_DTYPE))

    assert out.shape == (N, Cout, H, W), out.shape
    # Kernel and reference share the bf16 input-rounding contract, so only
    # f32 accumulation-order / one intermediate-rounding differences remain.
    max_err = float(jnp.max(jnp.abs(out - ref)))
    assert jnp.allclose(out, ref, atol=2e-2, rtol=2e-2), max_err

    print("KERNEL_OK")
</pallas_src>

<mosaic_0001>
module attributes {stable_mosaic.version = 11 : i64} {
  func.func @_conv_block_kernel(%arg0: i32, %arg1: memref<1x288x36xbf16, #tpu.memory_space<vmem>>, %arg2: memref<288x1xf32, #tpu.memory_space<vmem>>, %arg3: memref<36x8xbf16, #tpu.memory_space<vmem>>, %arg4: memref<1x8xf32, #tpu.memory_space<vmem>>, %arg5: memref<72x8xbf16, #tpu.memory_space<vmem>>, %arg6: memref<1x8xf32, #tpu.memory_space<vmem>>, %arg7: memref<1x288x8xf32, #tpu.memory_space<vmem>>, %arg8: memref<328x8xf32, #tpu.memory_space<vmem>>) attributes {dimension_semantics = [#tpu.dimension_semantics<parallel>], iteration_bounds = array<i64: 2>, scalar_prefetch = 0 : i64, scratch_operands = 1 : i64, tpu.core_type = #tpu.core_type<tc>, window_params = [{transform_indices = @transform_0, window_bounds = array<i64: 1, 288, 36>}, {pipeline_mode = #tpu.pipeline_mode<synchronous>, transform_indices = @transform_1, window_bounds = array<i64: 288, 1>}, {pipeline_mode = #tpu.pipeline_mode<synchronous>, transform_indices = @transform_2, window_bounds = array<i64: 36, 8>}, {pipeline_mode = #tpu.pipeline_mode<synchronous>, transform_indices = @transform_3, window_bounds = array<i64: 1, 8>}, {pipeline_mode = #tpu.pipeline_mode<synchronous>, transform_indices = @transform_4, window_bounds = array<i64: 72, 8>}, {pipeline_mode = #tpu.pipeline_mode<synchronous>, transform_indices = @transform_5, window_bounds = array<i64: 1, 8>}, {transform_indices = @transform_6, window_bounds = array<i64: 1, 288, 8>}]} {
    %c0 = arith.constant 0 : index
    %c0_0 = arith.constant 0 : index
    %c0_1 = arith.constant 0 : index
    %0 = vector.load %arg1[%c0, %c0_0, %c0_1] : memref<1x288x36xbf16, #tpu.memory_space<vmem>>, vector<1x288x36xbf16>
    %1 = vector.shape_cast %0 : vector<1x288x36xbf16> to vector<288x36xbf16>
    %c0_2 = arith.constant 0 : index
    %c0_3 = arith.constant 0 : index
    %2 = vector.load %arg3[%c0_2, %c0_3] : memref<36x8xbf16, #tpu.memory_space<vmem>>, vector<36x8xbf16>
    %cst = arith.constant dense<0.000000e+00> : vector<288x8xf32>
    %3 = tpu.matmul %1, %2, %cst {dimension_numbers = #tpu.dot_dimension_numbers<[1], [0], [0], [1], [0, 0, 1, 1], [], []>} : vector<288x36xbf16>, vector<36x8xbf16>, vector<288x8xf32> -> vector<288x8xf32>
    %c0_4 = arith.constant 0 : index
    %c0_5 = arith.constant 0 : index
    %4 = vector.load %arg4[%c0_4, %c0_5] : memref<1x8xf32, #tpu.memory_space<vmem>>, vector<1x8xf32>
    %5 = vector.broadcast %4 : vector<1x8xf32> to vector<288x8xf32>
    %6 = arith.addf %3, %5 : vector<288x8xf32>
    %cst_6 = arith.constant 0.000000e+00 : f32
    %7 = vector.broadcast %cst_6 : f32 to vector<288x8xf32>
    %8 = arith.cmpf ogt, %6, %7 : vector<288x8xf32>
    %cst_7 = arith.constant 2.000000e-01 : f32
    %9 = vector.broadcast %cst_7 : f32 to vector<288x8xf32>
    %10 = arith.mulf %9, %6 : vector<288x8xf32>
    %11 = arith.select %8, %6, %10 : vector<288x8xi1>, vector<288x8xf32>
    %c0_8 = arith.constant 0 : index
    %c0_9 = arith.constant 0 : index
    %12 = vector.load %arg2[%c0_8, %c0_9] : memref<288x1xf32, #tpu.memory_space<vmem>>, vector<288x1xf32>
    %13 = vector.broadcast %12 : vector<288x1xf32> to vector<288x8xf32>
    %14 = arith.mulf %11, %13 : vector<288x8xf32>
    %cst_10 = arith.constant 0.000000e+00 : f32
    %15 = vector.broadcast %cst_10 : f32 to vector<24x8xf32>
    %c0_11 = arith.constant 0 : index
    %c0_12 = arith.constant 0 : index
    %16 = vector.load %arg8[%c0_11, %c0_12] : memref<328x8xf32, #tpu.memory_space<vmem>>, vector<24x8xf32>
    tpu.vector_store %arg8[%c0_11, %c0_12], %15 {strides = array<i32>} : memref<328x8xf32, #tpu.memory_space<vmem>>, vector<24x8xf32>,
    %cst_13 = arith.constant 0.000000e+00 : f32
    %17 = vector.broadcast %cst_13 : f32 to vector<24x8xf32>
    %c304 = arith.constant 304 : index
    %c0_14 = arith.constant 0 : index
    %18 = vector.load %arg8[%c304, %c0_14] : memref<328x8xf32, #tpu.memory_space<vmem>>, vector<24x8xf32>
    tpu.vector_store %arg8[%c304, %c0_14], %17 {strides = array<i32>} : memref<328x8xf32, #tpu.memory_space<vmem>>, vector<24x8xf32>,
    %c19 = arith.constant 19 : index
    %c0_15 = arith.constant 0 : index
    %19 = vector.load %arg8[%c19, %c0_15] : memref<328x8xf32, #tpu.memory_space<vmem>>, vector<288x8xf32>
    tpu.vector_store %arg8[%c19, %c0_15], %14 {strides = array<i32>} : memref<328x8xf32, #tpu.memory_space<vmem>>, vector<288x8xf32>,
    %c0_16 = arith.constant 0 : index
    %c0_17 = arith.constant 0 : index
    %20 = vector.load %arg8[%c0_16, %c0_17] : memref<328x8xf32, #tpu.memory_space<vmem>>, vector<288x8xf32>
    %c1 = arith.constant 1 : index
    %c0_18 = arith.constant 0 : index
    %21 = vector.load %arg8[%c1, %c0_18] : memref<328x8xf32, #tpu.memory_space<vmem>>, vector<288x8xf32>
    %c2 = arith.constant 2 : index
    %c0_19 = arith.constant 0 : index
    %22 = vector.load %arg8[%c2, %c0_19] : memref<328x8xf32, #tpu.memory_space<vmem>>, vector<288x8xf32>
    %c18 = arith.constant 18 : index
    %c0_20 = arith.constant 0 : index
    %23 = vector.load %arg8[%c18, %c0_20] : memref<328x8xf32, #tpu.memory_space<vmem>>, vector<288x8xf32>
    %c19_21 = arith.constant 19 : index
    %c0_22 = arith.constant 0 : index
    %24 = vector.load %arg8[%c19_21, %c0_22] : memref<328x8xf32, #tpu.memory_space<vmem>>, vector<288x8xf32>
    %c20 = arith.constant 20 : index
    %c0_23 = arith.constant 0 : index
    %25 = vector.load %arg8[%c20, %c0_23] : memref<328x8xf32, #tpu.memory_space<vmem>>, vector<288x8xf32>
    %c36 = arith.constant 36 : index
    %c0_24 = arith.constant 0 : index
    %26 = vector.load %arg8[%c36, %c0_24] : memref<328x8xf32, #tpu.memory_space<vmem>>, vector<288x8xf32>
    %c37 = arith.constant 37 : index
    %c0_25 = arith.constant 0 : index
    %27 = vector.load %arg8[%c37, %c0_25] : memref<328x8xf32, #tpu.memory_space<vmem>>, vector<288x8xf32>
    %c38 = arith.constant 38 : index
    %c0_26 = arith.constant 0 : index
    %28 = vector.load %arg8[%c38, %c0_26] : memref<328x8xf32, #tpu.memory_space<vmem>>, vector<288x8xf32>
    %29 = tpu.concatenate %20, %21, %22, %23, %24, %25, %26, %27, %28 in 1 : vector<288x8xf32>, vector<288x8xf32>, vector<288x8xf32>, vector<288x8xf32>, vector<288x8xf32>, vector<288x8xf32>, vector<288x8xf32>, vector<288x8xf32>, vector<288x8xf32> -> vector<288x72xf32>
    %30 = arith.truncf %29 : vector<288x72xf32> to vector<288x72xbf16>
    %c0_27 = arith.constant 0 : index
    %c0_28 = arith.constant 0 : index
    %31 = vector.load %arg5[%c0_27, %c0_28] : memref<72x8xbf16, #tpu.memory_space<vmem>>, vector<72x8xbf16>
    %cst_29 = arith.constant dense<0.000000e+00> : vector<288x8xf32>
    %32 = tpu.matmul %30, %31, %cst_29 {dimension_numbers = #tpu.dot_dimension_numbers<[1], [0], [0], [1], [0, 0, 1, 1], [], []>} : vector<288x72xbf16>, vector<72x8xbf16>, vector<288x8xf32> -> vector<288x8xf32>
    %c0_30 = arith.constant 0 : index
    %c0_31 = arith.constant 0 : index
    %33 = vector.load %arg6[%c0_30, %c0_31] : memref<1x8xf32, #tpu.memory_space<vmem>>, vector<1x8xf32>
    %34 = vector.broadcast %33 : vector<1x8xf32> to vector<288x8xf32>
    %35 = arith.addf %32, %34 : vector<288x8xf32>
    %cst_32 = arith.constant 0.000000e+00 : f32
    %36 = vector.broadcast %cst_32 : f32 to vector<288x8xf32>
    %37 = arith.cmpf ogt, %35, %36 : vector<288x8xf32>
    %cst_33 = arith.constant 2.000000e-01 : f32
    %38 = vector.broadcast %cst_33 : f32 to vector<288x8xf32>
    %39 = arith.mulf %38, %35 : vector<288x8xf32>
    %40 = arith.select %37, %35, %39 : vector<288x8xi1>, vector<288x8xf32>
    %c0_34 = arith.constant 0 : index
    %c0_35 = arith.constant 0 : index
    %c0_36 = arith.constant 0 : index
    %41 = vector.load %arg7[%c0_34, %c0_35, %c0_36] : memref<1x288x8xf32, #tpu.memory_space<vmem>>, vector<1x288x8xf32>
    %42 = vector.shape_cast %41 : vector<1x288x8xf32> to vector<288x8xf32>
    %43 = vector.shape_cast %40 : vector<288x8xf32> to vector<1x288x8xf32>
    tpu.vector_store %arg7[%c0_34, %c0_35, %c0_36], %43 {strides = array<i32>} : memref<1x288x8xf32, #tpu.memory_space<vmem>>, vector<1x288x8xf32>,
    return
  }
  func.func @transform_0(%arg0: i32) -> (i32, i32, i32) {
    %c0_i32 = arith.constant 0 : i32
    %c0_i32_0 = arith.constant 0 : i32
    %c0_i32_1 = arith.constant 0 : i32
    return %arg0, %c0_i32, %c0_i32_0 : i32, i32, i32
  }
  func.func @transform_1(%arg0: i32) -> (i32, i32) {
    %c0_i32 = arith.constant 0 : i32
    %c0_i32_0 = arith.constant 0 : i32
    %c0_i32_1 = arith.constant 0 : i32
    return %c0_i32, %c0_i32_0 : i32, i32
  }
  func.func @transform_2(%arg0: i32) -> (i32, i32) {
    %c0_i32 = arith.constant 0 : i32
    %c0_i32_0 = arith.constant 0 : i32
    %c0_i32_1 = arith.constant 0 : i32
    return %c0_i32, %c0_i32_0 : i32, i32
  }
  func.func @transform_3(%arg0: i32) -> (i32, i32) {
    %c0_i32 = arith.constant 0 : i32
    %c0_i32_0 = arith.constant 0 : i32
    %c0_i32_1 = arith.constant 0 : i32
    return %c0_i32, %c0_i32_0 : i32, i32
  }
  func.func @transform_4(%arg0: i32) -> (i32, i32) {
    %c0_i32 = arith.constant 0 : i32
    %c0_i32_0 = arith.constant 0 : i32
    %c0_i32_1 = arith.constant 0 : i32
    return %c0_i32, %c0_i32_0 : i32, i32
  }
  func.func @transform_5(%arg0: i32) -> (i32, i32) {
    %c0_i32 = arith.constant 0 : i32
    %c0_i32_0 = arith.constant 0 : i32
    %c0_i32_1 = arith.constant 0 : i32
    return %c0_i32, %c0_i32_0 : i32, i32
  }
  func.func @transform_6(%arg0: i32) -> (i32, i32, i32) {
    %c0_i32 = arith.constant 0 : i32
    %c0_i32_0 = arith.constant 0 : i32
    %c0_i32_1 = arith.constant 0 : i32
    return %arg0, %c0_i32, %c0_i32_0 : i32, i32, i32
  }
}

</mosaic_0001>

<llo_original>
// kernel: tpu_custom_call.1
$region0: #{tpu_custom_call.1}
  #allocation0 [shape = 'u32[]', space=smem, size = 0x4, offset = 0x4, fixed_abs, tag = 'smem constant byte address 0x4 - core index']
  #allocation1 [shape = 'u32[144,128]{1,0:T(1,128)}', space=vmem, size = 0x12000, scoped, tag = 'internal scratch']
  #allocation2 [shape = 'f32[328,8]{1,0:T(8,128)}', space=vmem, size = 0x29000, scoped, tag = 'scratch operand']
  %s0 = inlined_call_operand.vmem [shape: bf16[2,288,36], index: 0, kind: input, shape index: {}]
  %s1 = inlined_call_operand.vmem [shape: f32[288,1], index: 1, kind: input, shape index: {}]
  %s2 = inlined_call_operand.vmem [shape: bf16[36,8], index: 2, kind: input, shape index: {}]
  %s3 = inlined_call_operand.vmem [shape: f32[1,8], index: 3, kind: input, shape index: {}]
  %s4 = inlined_call_operand.vmem [shape: bf16[72,8], index: 4, kind: input, shape index: {}]
  %s5 = inlined_call_operand.vmem [shape: f32[1,8], index: 5, kind: input, shape index: {}]
  %s6 = inlined_call_operand.vmem [shape: f32[2,288,8], index: 6, kind: output, shape index: {}]
  %s7 = sld [smem:[#allocation0]]
  $region57: #{tpu_custom_call.1} parent=0
    _
  %s9 = ssub.s32 1, %s7
  %s10 = scalar_select 0, %s9, %s7
  loop: start=0, step=1, limit=4
  $region2: #{tpu_custom_call.1} parent=0 // loop_pre_header
    _
  $region3: #{tpu_custom_call.1} parent=0 // loop_header
    %s12 = sphi 0, %s16
    %p13 = scmp.ge.s32.totalorder %s12, 4
    %s22 = sphi 0, %s24
    %s25 = sphi 0, %s22
    %s26 = sphi 0, %s25
    %s42 = sphi 0, %s26
    %s46 = sphi 0, %s46
    %s48 = sphi 0, %s46
    %s49 = sphi 0, %s48
    %s63 = sphi 0, %s49
    %s67 = sphi 0, %s67
    %s69 = sphi 0, %s67
    %s70 = sphi 0, %s69
    %s84 = sphi 0, %s70
    %s88 = sphi 0, %s88
    %s90 = sphi 0, %s88
    %s91 = sphi 0, %s90
    %s105 = sphi 0, %s91
    %s109 = sphi 0, %s109
    %s111 = sphi 0, %s109
    %s112 = sphi 0, %s111
    %s126 = sphi 0, %s112
    %s130 = sphi 0, %s130
    %s132 = sphi 0, %s130
    %s133 = sphi 0, %s132
    %s147 = sphi 0, %s133
    %s153 = sphi 0, %s155
    %s156 = sphi 0, %s153
    %s157 = sphi 0, %s156
    %s173 = sphi 0, %s157
  $region4: #{tpu_custom_call.1} parent=0 // loop_header_branch
    %15 = sbr.rel (%p13) target = $region8
  $region5: #{tpu_custom_call.1} parent=0 // loop_body
    %s17 = ssub.s32 %s12, 1
    %s18 = ssub.s32 %s12, 2
    %s19 = sadd.s32 %s12, 1
    %s20 = ssub.s32 %s12, %s19
    %p21 = scmp.eq.s32.totalorder %s20, 0
    %s23 = sadd.s32 %s22, 1
    %s24 = scalar_select %p21, %s22, %s23
    %p27 = pneg %p21
    %p28 = scmp.eq.s32.totalorder %s12, 1
    %p29 = por %p27, %p28
    %p30 = scmp.ne.s32.totalorder %s22, %s25
    %p31 = scmp.eq.s32.totalorder %s12, 0
    %p32 = por %p30, %p31
    %p33 = scmp.ne.s32.totalorder %s22, %s25
    %p34 = scmp.eq.s32.totalorder %s17, 1
    %p35 = por %p33, %p34
    %p36 = scmp.ne.s32.totalorder %s25, %s26
    %p37 = scmp.eq.s32.totalorder %s17, 0
    %p38 = por %p36, %p37
    %p39 = scmp.ne.s32.totalorder %s25, %s26
    %p40 = scmp.eq.s32.totalorder %s18, 1
    %p41 = por %p39, %p40
    %p43 = scmp.ne.s32.totalorder %s26, %s42
    %p44 = scmp.eq.s32.totalorder %s18, 0
    %p45 = por %p43, %p44
    %s47 = sadd.s32 %s46, 1
    %p50 = scmp.eq.s32.totalorder %s12, 1
    %p51 = scmp.ne.s32.totalorder %s46, %s48
    %p52 = scmp.eq.s32.totalorder %s12, 0
    %p53 = por %p51, %p52
    %p54 = scmp.ne.s32.totalorder %s46, %s48
    %p55 = scmp.eq.s32.totalorder %s17, 1
    %p56 = por %p54, %p55
    %p57 = scmp.ne.s32.totalorder %s48, %s49
    %p58 = scmp.eq.s32.totalorder %s17, 0
    %p59 = por %p57, %p58
    %p60 = scmp.ne.s32.totalorder %s48, %s49
    %p61 = scmp.eq.s32.totalorder %s18, 1
    %p62 = por %p60, %p61
    %p64 = scmp.ne.s32.totalorder %s49, %s63
    %p65 = scmp.eq.s32.totalorder %s18, 0
    %p66 = por %p64, %p65
    %s68 = sadd.s32 %s67, 1
    %p71 = scmp.eq.s32.totalorder %s12, 1
    %p72 = scmp.ne.s32.totalorder %s67, %s69
    %p73 = scmp.eq.s32.totalorder %s12, 0
    %p74 = por %p72, %p73
    %p75 = scmp.ne.s32.totalorder %s67, %s69
    %p76 = scmp.eq.s32.totalorder %s17, 1
    %p77 = por %p75, %p76
    %p78 = scmp.ne.s32.totalorder %s69, %s70
    %p79 = scmp.eq.s32.totalorder %s17, 0
    %p80 = por %p78, %p79
    %p81 = scmp.ne.s32.totalorder %s69, %s70
    %p82 = scmp.eq.s32.totalorder %s18, 1
    %p83 = por %p81, %p82
    %p85 = scmp.ne.s32.totalorder %s70, %s84
    %p86 = scmp.eq.s32.totalorder %s18, 0
    %p87 = por %p85, %p86
    %s89 = sadd.s32 %s88, 1
    %p92 = scmp.eq.s32.totalorder %s12, 1
    %p93 = scmp.ne.s32.totalorder %s88, %s90
    %p94 = scmp.eq.s32.totalorder %s12, 0
    %p95 = por %p93, %p94
    %p96 = scmp.ne.s32.totalorder %s88, %s90
    %p97 = scmp.eq.s32.totalorder %s17, 1
    %p98 = por %p96, %p97
    %p99 = scmp.ne.s32.totalorder %s90, %s91
    %p100 = scmp.eq.s32.totalorder %s17, 0
    %p101 = por %p99, %p100
    %p102 = scmp.ne.s32.totalorder %s90, %s91
    %p103 = scmp.eq.s32.totalorder %s18, 1
    %p104 = por %p102, %p103
    %p106 = scmp.ne.s32.totalorder %s91, %s105
    %p107 = scmp.eq.s32.totalorder %s18, 0
    %p108 = por %p106, %p107
    %s110 = sadd.s32 %s109, 1
    %p113 = scmp.eq.s32.totalorder %s12, 1
    %p114 = scmp.ne.s32.totalorder %s109, %s111
    %p115 = scmp.eq.s32.totalorder %s12, 0
    %p116 = por %p114, %p115
    %p117 = scmp.ne.s32.totalorder %s109, %s111
    %p118 = scmp.eq.s32.totalorder %s17, 1
    %p119 = por %p117, %p118
    %p120 = scmp.ne.s32.totalorder %s111, %s112
    %p121 = scmp.eq.s32.totalorder %s17, 0
    %p122 = por %p120, %p121
    %p123 = scmp.ne.s32.totalorder %s111, %s112
    %p124 = scmp.eq.s32.totalorder %s18, 1
    %p125 = por %p123, %p124
    %p127 = scmp.ne.s32.totalorder %s112, %s126
    %p128 = scmp.eq.s32.totalorder %s18, 0
    %p129 = por %p127, %p128
    %s131 = sadd.s32 %s130, 1
    %p134 = scmp.eq.s32.totalorder %s12, 1
    %p135 = scmp.ne.s32.totalorder %s130, %s132
    %p136 = scmp.eq.s32.totalorder %s12, 0
    %p137 = por %p135, %p136
    %p138 = scmp.ne.s32.totalorder %s130, %s132
    %p139 = scmp.eq.s32.totalorder %s17, 1
    %p140 = por %p138, %p139
    %p141 = scmp.ne.s32.totalorder %s132, %s133
    %p142 = scmp.eq.s32.totalorder %s17, 0
    %p143 = por %p141, %p142
    %p144 = scmp.ne.s32.totalorder %s132, %s133
    %p145 = scmp.eq.s32.totalorder %s18, 1
    %p146 = por %p144, %p145
    %p148 = scmp.ne.s32.totalorder %s133, %s147
    %p149 = scmp.eq.s32.totalorder %s18, 0
    %p150 = por %p148, %p149
    %s151 = ssub.s32 %s12, %s19
    %p152 = scmp.eq.s32.totalorder %s151, 0
    %s154 = sadd.s32 %s153, 1
    %s155 = scalar_select %p152, %s153, %s154
    %p158 = pneg %p152
    %p159 = scmp.eq.s32.totalorder %s12, 1
    %p160 = por %p158, %p159
    %p161 = scmp.ne.s32.totalorder %s153, %s156
    %p162 = scmp.eq.s32.totalorder %s12, 0
    %p163 = por %p161, %p162
    %p164 = scmp.ne.s32.totalorder %s153, %s156
    %p165 = scmp.eq.s32.totalorder %s17, 1
    %p166 = por %p164, %p165
    %p167 = scmp.ne.s32.totalorder %s156, %s157
    %p168 = scmp.eq.s32.totalorder %s17, 0
    %p169 = por %p167, %p168
    %p170 = scmp.ne.s32.totalorder %s156, %s157
    %p171 = scmp.eq.s32.totalorder %s18, 1
    %p172 = por %p170, %p171
    %p174 = scmp.ne.s32.totalorder %s157, %s173
    %p175 = scmp.eq.s32.totalorder %s18, 0
    %p176 = por %p174, %p175
    %p177 = scmp.le.s32.totalorder 1, %s12
    %p178 = scmp.lt.s32.totalorder %s12, 3
    %p179 = pnand %p177, %p178
    %p180 = pneg %p179
    // Predicated region
    $region9: #{tpu_custom_call.1} parent=5 // pred_check
      _
    $region10: #{tpu_custom_call.1} parent=5 // pred_check_branch
      %182 = sbr.rel (%p179) target = $region12
    $region11: #{tpu_custom_call.1} parent=5 // pred_region
      %s183 = ssub.s32 %s12, 1
      // Predicated region
      $region13: #{tpu_custom_call.1} parent=11 // pred_check
        %p184 = pneg %p59
      $region14: #{tpu_custom_call.1} parent=11 // pred_check_branch
        %186 = sbr.rel (%p184) target = $region16
      $region15: #{tpu_custom_call.1} parent=11 // pred_region
        _
      $region16: #{tpu_custom_call.1} parent=11 // pred_fallthru
        _
      // Predicated region
      $region17: #{tpu_custom_call.1} parent=11 // pred_check
        %p187 = pneg %p80
      $region18: #{tpu_custom_call.1} parent=11 // pred_check_branch
        %189 = sbr.rel (%p187) target = $region20
      $region19: #{tpu_custom_call.1} parent=11 // pred_region
        _
      $region20: #{tpu_custom_call.1} parent=11 // pred_fallthru
        _
      // Predicated region
      $region21: #{tpu_custom_call.1} parent=11 // pred_check
        %p190 = pneg %p101
      $region22: #{tpu_custom_call.1} parent=11 // pred_check_branch
        %192 = sbr.rel (%p190) target = $region24
      $region23: #{tpu_custom_call.1} parent=11 // pred_region
        _
      $region24: #{tpu_custom_call.1} parent=11 // pred_fallthru
        _
      // Predicated region
      $region25: #{tpu_custom_call.1} parent=11 // pred_check
        %p193 = pneg %p122
      $region26: #{tpu_custom_call.1} parent=11 // pred_check_branch
        %195 = sbr.rel (%p193) target = $region28
      $region27: #{tpu_custom_call.1} parent=11 // pred_region
        _
      $region28: #{tpu_custom_call.1} parent=11 // pred_fallthru
        _
      // Predicated region
      $region29: #{tpu_custom_call.1} parent=11 // pred_check
        %p196 = pneg %p143
      $region30: #{tpu_custom_call.1} parent=11 // pred_check_branch
        %198 = sbr.rel (%p196) target = $region32
      $region31: #{tpu_custom_call.1} parent=11 // pred_region
        _
      $region32: #{tpu_custom_call.1} parent=11 // pred_fallthru
        _
    $region12: #{tpu_custom_call.1} parent=5 // pred_fallthru
      _
    %p199 = scmp.lt.s32.totalorder %s12, 2
    // Predicated region
    $region33: #{tpu_custom_call.1} parent=5 // pred_check
      %p200 = pneg %p199
    $region34: #{tpu_custom_call.1} parent=5 // pred_check_branch
      %202 = sbr.rel (%p200) target = $region36
    $region35: #{tpu_custom_call.1} parent=5 // pred_region
      // Predicated region
      $region37: #{tpu_custom_call.1} parent=35 // pred_check
        %p203 = pneg %p32
      $region38: #{tpu_custom_call.1} parent=35 // pred_check_branch
        %205 = sbr.rel (%p203) target = $region40
      $region39: #{tpu_custom_call.1} parent=35 // pred_region
        %p206 = scmp.lt.s32.totalorder %s12, 1
        %s207 = scalar_select %p206, %s12, 1
        %s208 = smul.addr %s207, 36
        %s209 = smul.addr %s208, 4
        %s210 = scalar_lea.vmem %s0, %s209
      $region40: #{tpu_custom_call.1} parent=35 // pred_fallthru
        _
    $region36: #{tpu_custom_call.1} parent=5 // pred_fallthru
      _
    %p211 = scmp.le.s32.totalorder 1, %s12
    %p212 = scmp.lt.s32.totalorder %s12, 3
    %p213 = pnand %p211, %p212
    %p214 = pneg %p213
    // Predicated region
    $region41: #{tpu_custom_call.1} parent=5 // pred_check
      _
    $region42: #{tpu_custom_call.1} parent=5 // pred_check_branch
      %216 = sbr.rel (%p213) target = $region44
    $region43: #{tpu_custom_call.1} parent=5 // pred_region
      %s217 = ssub.s32 %s12, 1
      %p218 = scmp.lt.s32.totalorder %s17, 1
      %s219 = scalar_select %p218, %s17, 1
      %s220 = smul.addr %s219, 36
      %s221 = smul.addr %s220, 4
      %s222 = scalar_lea.vmem %s0, %s221
      %p223 = pneg %p38
      %p224 = pneg %p35
      %p225 = pneg %p59
      %p226 = pneg %p56
      %p227 = pneg %p80
      %p228 = pneg %p77
      %p229 = pneg %p101
      %p230 = pneg %p98
      %p231 = pneg %p122
      %p232 = pneg %p119
      %p233 = pneg %p143
      %p234 = pneg %p140
      %p235 = pneg %p169
      %p236 = pneg %p166
      %p237 = scmp.lt.s32.totalorder %s17, 1
      %s238 = scalar_select %p237, %s17, 1
      %s239 = smul.addr %s238, 36
      %s240 = smul.addr %s239, 8
      %s241 = scalar_lea.vmem %s6, %s240
      %p242 = scmp.lt.s32.totalorder %s17, 1
      %s243 = scalar_select %p242, %s17, 1
      %s244 = smul.addr %s243, 36
      %s245 = smul.addr %s244, 4
      %s246 = scalar_lea.vmem %s0, %s245
      %p247 = scmp.lt.s32.totalorder %s17, 1
      %s248 = scalar_select %p247, %s17, 1
      %s249 = smul.addr %s248, 36
      %s250 = smul.addr %s249, 8
      %s251 = scalar_lea.vmem %s6, %s250
      %v253 = vld [vmem:[%s246] sm:$0xf]
      %v254 = vld [vmem:[%s246 + $0x4] sm:$0xf]
      %v255 = vld [vmem:[%s246 + $0x8] sm:$0xf]
      %v256 = vld [vmem:[%s246 + $0xc] sm:$0xf]
      %v257 = vld [vmem:[%s246 + $0x10] sm:$0xf]
      %v258 = vld [vmem:[%s246 + $0x14] sm:$0xf]
      %v259 = vld [vmem:[%s246 + $0x18] sm:$0xf]
      %v260 = vld [vmem:[%s246 + $0x1c] sm:$0xf]
      %v261 = vld [vmem:[%s246 + $0x20] sm:$0xf]
      %v262 = vld [vmem:[%s246 + $0x24] sm:$0xf]
      %v263 = vld [vmem:[%s246 + $0x28] sm:$0xf]
      %v264 = vld [vmem:[%s246 + $0x2c] sm:$0xf]
      %v265 = vld [vmem:[%s246 + $0x30] sm:$0xf]
      %v266 = vld [vmem:[%s246 + $0x34] sm:$0xf]
      %v267 = vld [vmem:[%s246 + $0x38] sm:$0xf]
      %v268 = vld [vmem:[%s246 + $0x3c] sm:$0xf]
      %v269 = vld [vmem:[%s246 + $0x40] sm:$0xf]
      %v270 = vld [vmem:[%s246 + $0x44] sm:$0xf]
      %v271 = vld [vmem:[%s246 + $0x48] sm:$0xf]
      %v272 = vld [vmem:[%s246 + $0x4c] sm:$0xf]
      %v273 = vld [vmem:[%s246 + $0x50] sm:$0xf]
      %v274 = vld [vmem:[%s246 + $0x54] sm:$0xf]
      %v275 = vld [vmem:[%s246 + $0x58] sm:$0xf]
      %v276 = vld [vmem:[%s246 + $0x5c] sm:$0xf]
      %v277 = vld [vmem:[%s246 + $0x60] sm:$0xf]
      %v278 = vld [vmem:[%s246 + $0x64] sm:$0xf]
      %v279 = vld [vmem:[%s246 + $0x68] sm:$0xf]
      %v280 = vld [vmem:[%s246 + $0x6c] sm:$0xf]
      %v281 = vld [vmem:[%s246 + $0x70] sm:$0xf]
      %v282 = vld [vmem:[%s246 + $0x74] sm:$0xf]
      %v283 = vld [vmem:[%s246 + $0x78] sm:$0xf]
      %v284 = vld [vmem:[%s246 + $0x7c] sm:$0xf]
      %v285 = vld [vmem:[%s246 + $0x80] sm:$0xf]
      %v286 = vld [vmem:[%s246 + $0x84] sm:$0xf]
      %v287 = vld [vmem:[%s246 + $0x88] sm:$0xf]
      %v288 = vld [vmem:[%s246 + $0x8c] sm:$0xf]
      %v289 = vld [vmem:[%s2] sm:$0xf]
      %v290 = vld [vmem:[%s2 + $0x4] sm:$0xf]
      %v291 = vld [vmem:[%s2 + $0x8] sm:$0xf]
      %v292 = vld [vmem:[%s2 + $0xc] sm:$0xf]
      %v293 = vld [vmem:[%s2 + $0x10] sm:$0x3]
      %v294 = vld [vmem:[%s3] sm:$0x1]
      %v296 = vlaneseq
      %v297 = vshrl.u32 %v296, 7
      %v298 = vsub.s32 0, %v297
      %v299 = vrot.slane %v294, %v298
      %v337 = vunpack.c.l.b16 %v253
      %v338 = vunpack.c.l.b16 %v254
      %v339 = vunpack.c.l.b16 %v255
      %v340 = vunpack.c.l.b16 %v256
      %v341 = vunpack.c.l.b16 %v257
      %v342 = vunpack.c.l.b16 %v258
      %v343 = vunpack.c.l.b16 %v259
      %v344 = vunpack.c.l.b16 %v260
      %v345 = vunpack.c.l.b16 %v261
      %v346 = vunpack.c.l.b16 %v262
      %v347 = vunpack.c.l.b16 %v263
      %v348 = vunpack.c.l.b16 %v264
      %v349 = vunpack.c.l.b16 %v265
      %v350 = vunpack.c.l.b16 %v266
      %v351 = vunpack.c.l.b16 %v267
      %v352 = vunpack.c.l.b16 %v268
      %v353 = vunpack.c.l.b16 %v269
      %v354 = vunpack.c.l.b16 %v270
      %v355 = vunpack.c.l.b16 %v271
      %v356 = vunpack.c.l.b16 %v272
      %v357 = vunpack.c.l.b16 %v273
      %v358 = vunpack.c.l.b16 %v274
      %v359 = vunpack.c.l.b16 %v275
      %v360 = vunpack.c.l.b16 %v276
      %v361 = vunpack.c.l.b16 %v277
      %v362 = vunpack.c.l.b16 %v278
      %v363 = vunpack.c.l.b16 %v279
      %v364 = vunpack.c.l.b16 %v280
      %v365 = vunpack.c.l.b16 %v281
      %v366 = vunpack.c.l.b16 %v282
      %v367 = vunpack.c.l.b16 %v283
      %v368 = vunpack.c.l.b16 %v284
      %v369 = vunpack.c.l.b16 %v285
      %v370 = vunpack.c.l.b16 %v286
      %v371 = vunpack.c.l.b16 %v287
      %v372 = vunpack.c.l.b16 %v288
      %v373 = vpack.c.b16 %v338, %v337
      %v374 = vpack.c.b16 %v340, %v339
      %v375 = vpack.c.b16 %v342, %v341
      %v376 = vpack.c.b16 %v344, %v343
      %v377 = vpack.c.b16 %v346, %v345
      %v378 = vpack.c.b16 %v348, %v347
      %v379 = vpack.c.b16 %v350, %v349
      %v380 = vpack.c.b16 %v352, %v351
      %v381 = vpack.c.b16 %v354, %v353
      %v382 = vpack.c.b16 %v356, %v355
      %v383 = vpack.c.b16 %v358, %v357
      %v384 = vpack.c.b16 %v360, %v359
      %v385 = vpack.c.b16 %v362, %v361
      %v386 = vpack.c.b16 %v364, %v363
      %v387 = vpack.c.b16 %v366, %v365
      %v388 = vpack.c.b16 %v368, %v367
      %v389 = vpack.c.b16 %v370, %v369
      %v390 = vpack.c.b16 %v372, %v371
      %v396 = vunpack.c.l.b16 %v289
      %v397 = vunpack.c.l.b16 %v290
      %v398 = vunpack.c.l.b16 %v291
      %v399 = vunpack.c.l.b16 %v292
      %v400 = vunpack.c.l.b16 %v293
      %v401 = vpack.c.b16 %v397, %v396
      %v402 = vpack.c.b16 %v399, %v398
      %v403 = vpack.c.b16 %v400, %v400
      %vm406 = vcmask 293888
      %v408 = vsel %vm406, %v373, 0
      %v411 = vsel %vm406, %v374, 0
      %v414 = vsel %vm406, %v375, 0
      %v417 = vsel %vm406, %v376, 0
      %v420 = vsel %vm406, %v377, 0
      %v423 = vsel %vm406, %v378, 0
      %v426 = vsel %vm406, %v379, 0
      %v429 = vsel %vm406, %v380, 0
      %v432 = vsel %vm406, %v381, 0
      %v435 = vsel %vm406, %v382, 0
      %v438 = vsel %vm406, %v383, 0
      %v441 = vsel %vm406, %v384, 0
      %v444 = vsel %vm406, %v385, 0
      %v447 = vsel %vm406, %v386, 0
      %v450 = vsel %vm406, %v387, 0
      %v453 = vsel %vm406, %v388, 0
      %v456 = vsel %vm406, %v389, 0
      %v459 = vsel %vm406, %v390, 0
      %vm461 = vcmask 1041408
      %v463 = vsel %vm461, %v403, 0
      %465 = vmatprep.subr.bf16.mxu0 0
      %466 = vmatpush1.bf16.msra.mxu0 %v401
      %467 = vmatprep.subr.bf16.mxu0 0
      %468 = vmatpush1.bf16.msra.mxu0 %v402
      %469 = vmatprep.subr.bf16.mxu0 0
      %470 = vmatpush1.bf16.msra.mxu0 %v463
      %471 = vmatprep.subr.bf16.mxu0 0
      %472 = vmatpush1.bf16.msra.mxu0 0
      %473 = vmatprep.subr.bf16.mxu0 0
      %474 = vmatpush1.bf16.msra.mxu0 0
      %475 = vmatprep.subr.bf16.mxu0 0
      %476 = vmatpush1.bf16.msra.mxu0 0
      %477 = vmatprep.subr.bf16.mxu0 0
      %478 = vmatpush1.bf16.msra.mxu0 0
      %479 = vmatprep.subr.bf16.mxu0 0
      %480 = vmatpush1.bf16.msra.mxu0 0
      %481 = vmatprep.subr.bf16.mxu0 0
      %482 = vmatpush1.bf16.msra.mxu0 0
      %483 = vmatprep.subr.bf16.mxu0 0
      %484 = vmatpush1.bf16.msra.mxu0 0
      %485 = vmatprep.subr.bf16.mxu0 0
      %486 = vmatpush1.bf16.msra.mxu0 0
      %487 = vmatprep.subr.bf16.mxu0 0
      %488 = vmatpush1.bf16.msra.mxu0 0
      %489 = vmatprep.subr.bf16.mxu0 0
      %490 = vmatpush1.bf16.msra.mxu0 0
      %491 = vmatprep.subr.bf16.mxu0 0
      %492 = vmatpush1.bf16.msra.mxu0 0
      %493 = vmatprep.subr.bf16.mxu0 0
      %494 = vmatpush1.bf16.msra.mxu0 0
      %495 = vmatprep.subr.bf16.mxu0 0
      %496 = vmatpush1.bf16.msra.mxu0 0
      %497 = vmatprep.mubr.bf16.mxu0 0
      %498 = vmatmul.mubr.bf16.gmra.mrb[0].mxu0 %v408
      %v499 = vpop.f32.mrb[0].mxu0
      %v500 = vadd.f32 %v299, %v499
      %v501 = vpop.f32.mrb[0].mxu0
      %v502 = vpop.f32.mrb[0].mxu0
      %v503 = vadd.f32 %v299, %v502
      %v504 = vpop.f32.mrb[0].mxu0
      %505 = vmatprep.mubr.bf16.mxu0 0
      %506 = vmatmul.mubr.bf16.gmra.mrb[0].mxu0 %v411
      %v507 = vpop.f32.mrb[0].mxu0
      %v508 = vadd.f32 %v299, %v507
      %v509 = vpop.f32.mrb[0].mxu0
      %v510 = vpop.f32.mrb[0].mxu0
      %v511 = vadd.f32 %v299, %v510
      %v512 = vpop.f32.mrb[0].mxu0
      %513 = vmatprep.mubr.bf16.mxu0 0
      %514 = vmatmul.mubr.bf16.gmra.mrb[0].mxu0 %v414
      %v515 = vpop.f32.mrb[0].mxu0
      %v516 = vadd.f32 %v299, %v515
      %v517 = vpop.f32.mrb[0].mxu0
      %v518 = vpop.f32.mrb[0].mxu0
      %v519 = vadd.f32 %v299, %v518
      %v520 = vpop.f32.mrb[0].mxu0
      %521 = vmatprep.mubr.bf16.mxu0 0
      %522 = vmatmul.mubr.bf16.gmra.mrb[0].mxu0 %v417
      %v523 = vpop.f32.mrb[0].mxu0
      %v524 = vadd.f32 %v299, %v523
      %v525 = vpop.f32.mrb[0].mxu0
      %v526 = vpop.f32.mrb[0].mxu0
      %v527 = vadd.f32 %v299, %v526
      %v528 = vpop.f32.mrb[0].mxu0
      %529 = vmatprep.mubr.bf16.mxu0 0
      %530 = vmatmul.mubr.bf16.gmra.mrb[0].mxu0 %v420
      %v531 = vpop.f32.mrb[0].mxu0
      %v532 = vadd.f32 %v299, %v531
      %v533 = vpop.f32.mrb[0].mxu0
      %v534 = vpop.f32.mrb[0].mxu0
      %v535 = vadd.f32 %v299, %v534
      %v536 = vpop.f32.mrb[0].mxu0
      %537 = vmatprep.mubr.bf16.mxu0 0
      %538 = vmatmul.mubr.bf16.gmra.mrb[0].mxu0 %v423
      %v539 = vpop.f32.mrb[0].mxu0
      %v540 = vadd.f32 %v299, %v539
      %v541 = vpop.f32.mrb[0].mxu0
      %v542 = vpop.f32.mrb[0].mxu0
      %v543 = vadd.f32 %v299, %v542
      %v544 = vpop.f32.mrb[0].mxu0
      %545 = vmatprep.mubr.bf16.mxu0 0
      %546 = vmatmul.mubr.bf16.gmra.mrb[0].mxu0 %v426
      %v547 = vpop.f32.mrb[0].mxu0
      %v548 = vadd.f32 %v299, %v547
      %v549 = vpop.f32.mrb[0].mxu0
      %v550 = vpop.f32.mrb[0].mxu0
      %v551 = vadd.f32 %v299, %v550
      %v552 = vpop.f32.mrb[0].mxu0
      %553 = vmatprep.mubr.bf16.mxu0 0
      %554 = vmatmul.mubr.bf16.gmra.mrb[0].mxu0 %v429
      %v555 = vpop.f32.mrb[0].mxu0
      %v556 = vadd.f32 %v299, %v555
      %v557 = vpop.f32.mrb[0].mxu0
      %v558 = vpop.f32.mrb[0].mxu0
      %v559 = vadd.f32 %v299, %v558
      %v560 = vpop.f32.mrb[0].mxu0
      %561 = vmatprep.mubr.bf16.mxu0 0
      %562 = vmatmul.mubr.bf16.gmra.mrb[0].mxu0 %v432
      %v563 = vpop.f32.mrb[0].mxu0
      %v564 = vadd.f32 %v299, %v563
      %v565 = vpop.f32.mrb[0].mxu0
      %v566 = vpop.f32.mrb[0].mxu0
      %v567 = vadd.f32 %v299, %v566
      %v568 = vpop.f32.mrb[0].mxu0
      %569 = vmatprep.mubr.bf16.mxu0 0
      %570 = vmatmul.mubr.bf16.gmra.mrb[0].mxu0 %v435
      %v571 = vpop.f32.mrb[0].mxu0
      %v572 = vadd.f32 %v299, %v571
      %v573 = vpop.f32.mrb[0].mxu0
      %v574 = vpop.f32.mrb[0].mxu0
      %v575 = vadd.f32 %v299, %v574
      %v576 = vpop.f32.mrb[0].mxu0
      %577 = vmatprep.mubr.bf16.mxu0 0
      %578 = vmatmul.mubr.bf16.gmra.mrb[0].mxu0 %v438
      %v579 = vpop.f32.mrb[0].mxu0
      %v580 = vadd.f32 %v299, %v579
      %v581 = vpop.f32.mrb[0].mxu0
      %v582 = vpop.f32.mrb[0].mxu0
      %v583 = vadd.f32 %v299, %v582
      %v584 = vpop.f32.mrb[0].mxu0
      %585 = vmatprep.mubr.bf16.mxu0 0
      %586 = vmatmul.mubr.bf16.gmra.mrb[0].mxu0 %v441
      %v587 = vpop.f32.mrb[0].mxu0
      %v588 = vadd.f32 %v299, %v587
      %v589 = vpop.f32.mrb[0].mxu0
      %v590 = vpop.f32.mrb[0].mxu0
      %v591 = vadd.f32 %v299, %v590
      %v592 = vpop.f32.mrb[0].mxu0
      %593 = vmatprep.mubr.bf16.mxu0 0
      %594 = vmatmul.mubr.bf16.gmra.mrb[0].mxu0 %v444
      %v595 = vpop.f32.mrb[0].mxu0
      %v596 = vadd.f32 %v299, %v595
      %v597 = vpop.f32.mrb[0].mxu0
      %v598 = vpop.f32.mrb[0].mxu0
      %v599 = vadd.f32 %v299, %v598
      %v600 = vpop.f32.mrb[0].mxu0
      %601 = vmatprep.mubr.bf16.mxu0 0
      %602 = vmatmul.mubr.bf16.gmra.mrb[0].mxu0 %v447
      %v603 = vpop.f32.mrb[0].mxu0
      %v604 = vadd.f32 %v299, %v603
      %v605 = vpop.f32.mrb[0].mxu0
      %v606 = vpop.f32.mrb[0].mxu0
      %v607 = vadd.f32 %v299, %v606
      %v608 = vpop.f32.mrb[0].mxu0
      %609 = vmatprep.mubr.bf16.mxu0 0
      %610 = vmatmul.mubr.bf16.gmra.mrb[0].mxu0 %v450
      %v611 = vpop.f32.mrb[0].mxu0
      %v612 = vadd.f32 %v299, %v611
      %v613 = vpop.f32.mrb[0].mxu0
      %v614 = vpop.f32.mrb[0].mxu0
      %v615 = vadd.f32 %v299, %v614
      %v616 = vpop.f32.mrb[0].mxu0
      %617 = vmatprep.mubr.bf16.mxu0 0
      %618 = vmatmul.mubr.bf16.gmra.mrb[0].mxu0 %v453
      %v619 = vpop.f32.mrb[0].mxu0
      %v620 = vadd.f32 %v299, %v619
      %v621 = vpop.f32.mrb[0].mxu0
      %v622 = vpop.f32.mrb[0].mxu0
      %v623 = vadd.f32 %v299, %v622
      %v624 = vpop.f32.mrb[0].mxu0
      %625 = vmatprep.mubr.bf16.mxu0 0
      %626 = vmatmul.mubr.bf16.gmra.mrb[0].mxu0 %v456
      %v627 = vpop.f32.mrb[0].mxu0
      %v628 = vadd.f32 %v299, %v627
      %v629 = vpop.f32.mrb[0].mxu0
      %v630 = vpop.f32.mrb[0].mxu0
      %v631 = vadd.f32 %v299, %v630
      %v632 = vpop.f32.mrb[0].mxu0
      %633 = vmatprep.mubr.bf16.mxu0 0
      %634 = vmatmul.mubr.bf16.gmra.mrb[0].mxu0 %v459
      %v635 = vpop.f32.mrb[0].mxu0
      %v636 = vadd.f32 %v299, %v635
      %v637 = vpop.f32.mrb[0].mxu0
      %v638 = vpop.f32.mrb[0].mxu0
      %v639 = vadd.f32 %v299, %v638
      %v640 = vpop.f32.mrb[0].mxu0
      %641 = vdwg.mxu0
      %vm642 = vcmp.gt.f32.partialorder %v500, 0.0
      %vm643 = vcmp.gt.f32.partialorder %v503, 0.0
      %vm644 = vcmp.gt.f32.partialorder %v508, 0.0
      %vm645 = vcmp.gt.f32.partialorder %v511, 0.0
      %vm646 = vcmp.gt.f32.partialorder %v516, 0.0
      %vm647 = vcmp.gt.f32.partialorder %v519, 0.0
      %vm648 = vcmp.gt.f32.partialorder %v524, 0.0
      %vm649 = vcmp.gt.f32.partialorder %v527, 0.0
      %vm650 = vcmp.gt.f32.partialorder %v532, 0.0
      %vm651 = vcmp.gt.f32.partialorder %v535, 0.0
      %vm652 = vcmp.gt.f32.partialorder %v540, 0.0
      %vm653 = vcmp.gt.f32.partialorder %v543, 0.0
      %vm654 = vcmp.gt.f32.partialorder %v548, 0.0
      %vm655 = vcmp.gt.f32.partialorder %v551, 0.0
      %vm656 = vcmp.gt.f32.partialorder %v556, 0.0
      %vm657 = vcmp.gt.f32.partialorder %v559, 0.0
      %vm658 = vcmp.gt.f32.partialorder %v564, 0.0
      %vm659 = vcmp.gt.f32.partialorder %v567, 0.0
      %vm660 = vcmp.gt.f32.partialorder %v572, 0.0
      %vm661 = vcmp.gt.f32.partialorder %v575, 0.0
      %vm662 = vcmp.gt.f32.partialorder %v580, 0.0
      %vm663 = vcmp.gt.f32.partialorder %v583, 0.0
      %vm664 = vcmp.gt.f32.partialorder %v588, 0.0
      %vm665 = vcmp.gt.f32.partialorder %v591, 0.0
      %vm666 = vcmp.gt.f32.partialorder %v596, 0.0
      %vm667 = vcmp.gt.f32.partialorder %v599, 0.0
      %vm668 = vcmp.gt.f32.partialorder %v604, 0.0
      %vm669 = vcmp.gt.f32.partialorder %v607, 0.0
      %vm670 = vcmp.gt.f32.partialorder %v612, 0.0
      %vm671 = vcmp.gt.f32.partialorder %v615, 0.0
      %vm672 = vcmp.gt.f32.partialorder %v620, 0.0
      %vm673 = vcmp.gt.f32.partialorder %v623, 0.0
      %vm674 = vcmp.gt.f32.partialorder %v628, 0.0
      %vm675 = vcmp.gt.f32.partialorder %v631, 0.0
      %vm676 = vcmp.gt.f32.partialorder %v636, 0.0
      %vm677 = vcmp.gt.f32.partialorder %v639, 0.0
      %v678 = vmul.f32 %v500, 0.2
      %v679 = vmul.f32 %v503, 0.2
      %v680 = vmul.f32 %v508, 0.2
      %v681 = vmul.f32 %v511, 0.2
      %v682 = vmul.f32 %v516, 0.2
      %v683 = vmul.f32 %v519, 0.2
      %v684 = vmul.f32 %v524, 0.2
      %v685 = vmul.f32 %v527, 0.2
      %v686 = vmul.f32 %v532, 0.2
      %v687 = vmul.f32 %v535, 0.2
      %v688 = vmul.f32 %v540, 0.2
      %v689 = vmul.f32 %v543, 0.2
      %v690 = vmul.f32 %v548, 0.2
      %v691 = vmul.f32 %v551, 0.2
      %v692 = vmul.f32 %v556, 0.2
      %v693 = vmul.f32 %v559, 0.2
      %v694 = vmul.f32 %v564, 0.2
      %v695 = vmul.f32 %v567, 0.2
      %v696 = vmul.f32 %v572, 0.2
      %v697 = vmul.f32 %v575, 0.2
      %v698 = vmul.f32 %v580, 0.2
      %v699 = vmul.f32 %v583, 0.2
      %v700 = vmul.f32 %v588, 0.2
      %v701 = vmul.f32 %v591, 0.2
      %v702 = vmul.f32 %v596, 0.2
      %v703 = vmul.f32 %v599, 0.2
      %v704 = vmul.f32 %v604, 0.2
      %v705 = vmul.f32 %v607, 0.2
      %v706 = vmul.f32 %v612, 0.2
      %v707 = vmul.f32 %v615, 0.2
      %v708 = vmul.f32 %v620, 0.2
      %v709 = vmul.f32 %v623, 0.2
      %v710 = vmul.f32 %v628, 0.2
      %v711 = vmul.f32 %v631, 0.2
      %v712 = vmul.f32 %v636, 0.2
      %v713 = vmul.f32 %v639, 0.2
      %v714 = vsel %vm642, %v500, %v678
      %v715 = vsel %vm643, %v503, %v679
      %v716 = vsel %vm644, %v508, %v680
      %v717 = vsel %vm645, %v511, %v681
      %v718 = vsel %vm646, %v516, %v682
      %v719 = vsel %vm647, %v519, %v683
      %v720 = vsel %vm648, %v524, %v684
      %v721 = vsel %vm649, %v527, %v685
      %v722 = vsel %vm650, %v532, %v686
      %v723 = vsel %vm651, %v535, %v687
      %v724 = vsel %vm652, %v540, %v688
      %v725 = vsel %vm653, %v543, %v689
      %v726 = vsel %vm654, %v548, %v690
      %v727 = vsel %vm655, %v551, %v691
      %v728 = vsel %vm656, %v556, %v692
      %v729 = vsel %vm657, %v559, %v693
      %v730 = vsel %vm658, %v564, %v694
      %v731 = vsel %vm659, %v567, %v695
      %v732 = vsel %vm660, %v572, %v696
      %v733 = vsel %vm661, %v575, %v697
      %v734 = vsel %vm662, %v580, %v698
      %v735 = vsel %vm663, %v583, %v699
      %v736 = vsel %vm664, %v588, %v700
      %v737 = vsel %vm665, %v591, %v701
      %v738 = vsel %vm666, %v596, %v702
      %v739 = vsel %vm667, %v599, %v703
      %v740 = vsel %vm668, %v604, %v704
      %v741 = vsel %vm669, %v607, %v705
      %v742 = vsel %vm670, %v612, %v706
      %v743 = vsel %vm671, %v615, %v707
      %v744 = vsel %vm672, %v620, %v708
      %v745 = vsel %vm673, %v623, %v709
      %v746 = vsel %vm674, %v628, %v710
      %v747 = vsel %vm675, %v631, %v711
      %v748 = vsel %vm676, %v636, %v712
      %v749 = vsel %vm677, %v639, %v713
      %v750 = vld [vmem:[%s1] sm:$0xff]
      %v751 = vld [vmem:[%s1 + $0x8] sm:$0xff]
      %v752 = vld [vmem:[%s1 + $0x10] sm:$0xff]
      %v753 = vld [vmem:[%s1 + $0x18] sm:$0xff]
      %v754 = vld [vmem:[%s1 + $0x20] sm:$0xff]
      %v755 = vld [vmem:[%s1 + $0x28] sm:$0xff]
      %v756 = vld [vmem:[%s1 + $0x30] sm:$0xff]
      %v757 = vld [vmem:[%s1 + $0x38] sm:$0xff]
      %v758 = vld [vmem:[%s1 + $0x40] sm:$0xff]
      %v759 = vld [vmem:[%s1 + $0x48] sm:$0xff]
      %v760 = vld [vmem:[%s1 + $0x50] sm:$0xff]
      %v761 = vld [vmem:[%s1 + $0x58] sm:$0xff]
      %v762 = vld [vmem:[%s1 + $0x60] sm:$0xff]
      %v763 = vld [vmem:[%s1 + $0x68] sm:$0xff]
      %v764 = vld [vmem:[%s1 + $0x70] sm:$0xff]
      %v765 = vld [vmem:[%s1 + $0x78] sm:$0xff]
      %v766 = vld [vmem:[%s1 + $0x80] sm:$0xff]
      %v767 = vld [vmem:[%s1 + $0x88] sm:$0xff]
      %v768 = vld [vmem:[%s1 + $0x90] sm:$0xff]
      %v769 = vld [vmem:[%s1 + $0x98] sm:$0xff]
      %v770 = vld [vmem:[%s1 + $0xa0] sm:$0xff]
      %v771 = vld [vmem:[%s1 + $0xa8] sm:$0xff]
      %v772 = vld [vmem:[%s1 + $0xb0] sm:$0xff]
      %v773 = vld [vmem:[%s1 + $0xb8] sm:$0xff]
      %v774 = vld [vmem:[%s1 + $0xc0] sm:$0xff]
      %v775 = vld [vmem:[%s1 + $0xc8] sm:$0xff]
      %v776 = vld [vmem:[%s1 + $0xd0] sm:$0xff]
      %v777 = vld [vmem:[%s1 + $0xd8] sm:$0xff]
      %v778 = vld [vmem:[%s1 + $0xe0] sm:$0xff]
      %v779 = vld [vmem:[%s1 + $0xe8] sm:$0xff]
      %v780 = vld [vmem:[%s1 + $0xf0] sm:$0xff]
      %v781 = vld [vmem:[%s1 + $0xf8] sm:$0xff]
      %v782 = vld [vmem:[%s1 + $0x100] sm:$0xff]
      %v783 = vld [vmem:[%s1 + $0x108] sm:$0xff]
      %v784 = vld [vmem:[%s1 + $0x110] sm:$0xff]
      %v785 = vld [vmem:[%s1 + $0x118] sm:$0xff]
      %787 = vset.pattern.permute.xlu0 0
      %788 = vperm.xlu0 %787, %v750
      %v789 = vpop.permute.xlu0 %788
      %792 = vset.pattern.permute.xlu0 0
      %793 = vperm.xlu0 %792, %v751
      %v794 = vpop.permute.xlu0 %793
      %797 = vset.pattern.permute.xlu0 0
      %798 = vperm.xlu0 %797, %v752
      %v799 = vpop.permute.xlu0 %798
      %802 = vset.pattern.permute.xlu0 0
      %803 = vperm.xlu0 %802, %v753
      %v804 = vpop.permute.xlu0 %803
      %807 = vset.pattern.permute.xlu0 0
      %808 = vperm.xlu0 %807, %v754
      %v809 = vpop.permute.xlu0 %808
      %812 = vset.pattern.permute.xlu0 0
      %813 = vperm.xlu0 %812, %v755
      %v814 = vpop.permute.xlu0 %813
      %817 = vset.pattern.permute.xlu0 0
      %818 = vperm.xlu0 %817, %v756
      %v819 = vpop.permute.xlu0 %818
      %822 = vset.pattern.permute.xlu0 0
      %823 = vperm.xlu0 %822, %v757
      %v824 = vpop.permute.xlu0 %823
      %827 = vset.pattern.permute.xlu0 0
      %828 = vperm.xlu0 %827, %v758
      %v829 = vpop.permute.xlu0 %828
      %832 = vset.pattern.permute.xlu0 0
      %833 = vperm.xlu0 %832, %v759
      %v834 = vpop.permute.xlu0 %833
      %837 = vset.pattern.permute.xlu0 0
      %838 = vperm.xlu0 %837, %v760
      %v839 = vpop.permute.xlu0 %838
      %842 = vset.pattern.permute.xlu0 0
      %843 = vperm.xlu0 %842, %v761
      %v844 = vpop.permute.xlu0 %843
      %847 = vset.pattern.permute.xlu0 0
      %848 = vperm.xlu0 %847, %v762
      %v849 = vpop.permute.xlu0 %848
      %852 = vset.pattern.permute.xlu0 0
      %853 = vperm.xlu0 %852, %v763
      %v854 = vpop.permute.xlu0 %853
      %857 = vset.pattern.permute.xlu0 0
      %858 = vperm.xlu0 %857, %v764
      %v859 = vpop.permute.xlu0 %858
      %862 = vset.pattern.permute.xlu0 0
      %863 = vperm.xlu0 %862, %v765
      %v864 = vpop.permute.xlu0 %863
      %867 = vset.pattern.permute.xlu0 0
      %868 = vperm.xlu0 %867, %v766
      %v869 = vpop.permute.xlu0 %868
      %872 = vset.pattern.permute.xlu0 0
      %873 = vperm.xlu0 %872, %v767
      %v874 = vpop.permute.xlu0 %873
      %877 = vset.pattern.permute.xlu0 0
      %878 = vperm.xlu0 %877, %v768
      %v879 = vpop.permute.xlu0 %878
      %882 = vset.pattern.permute.xlu0 0
      %883 = vperm.xlu0 %882, %v769
      %v884 = vpop.permute.xlu0 %883
      %887 = vset.pattern.permute.xlu0 0
      %888 = vperm.xlu0 %887, %v770
      %v889 = vpop.permute.xlu0 %888
      %892 = vset.pattern.permute.xlu0 0
      %893 = vperm.xlu0 %892, %v771
      %v894 = vpop.permute.xlu0 %893
      %897 = vset.pattern.permute.xlu0 0
      %898 = vperm.xlu0 %897, %v772
      %v899 = vpop.permute.xlu0 %898
      %902 = vset.pattern.permute.xlu0 0
      %903 = vperm.xlu0 %902, %v773
      %v904 = vpop.permute.xlu0 %903
      %907 = vset.pattern.permute.xlu0 0
      %908 = vperm.xlu0 %907, %v774
      %v909 = vpop.permute.xlu0 %908
      %912 = vset.pattern.permute.xlu0 0
      %913 = vperm.xlu0 %912, %v775
      %v914 = vpop.permute.xlu0 %913
      %917 = vset.pattern.permute.xlu0 0
      %918 = vperm.xlu0 %917, %v776
      %v919 = vpop.permute.xlu0 %918
      %922 = vset.pattern.permute.xlu0 0
      %923 = vperm.xlu0 %922, %v777
      %v924 = vpop.permute.xlu0 %923
      %927 = vset.pattern.permute.xlu0 0
      %928 = vperm.xlu0 %927, %v778
      %v929 = vpop.permute.xlu0 %928
      %932 = vset.pattern.permute.xlu0 0
      %933 = vperm.xlu0 %932, %v779
      %v934 = vpop.permute.xlu0 %933
      %937 = vset.pattern.permute.xlu0 0
      %938 = vperm.xlu0 %937, %v780
      %v939 = vpop.permute.xlu0 %938
      %942 = vset.pattern.permute.xlu0 0
      %943 = vperm.xlu0 %942, %v781
      %v944 = vpop.permute.xlu0 %943
      %947 = vset.pattern.permute.xlu0 0
      %948 = vperm.xlu0 %947, %v782
      %v949 = vpop.permute.xlu0 %948
      %952 = vset.pattern.permute.xlu0 0
      %953 = vperm.xlu0 %952, %v783
      %v954 = vpop.permute.xlu0 %953
      %957 = vset.pattern.permute.xlu0 0
      %958 = vperm.xlu0 %957, %v784
      %v959 = vpop.permute.xlu0 %958
      %962 = vset.pattern.permute.xlu0 0
      %963 = vperm.xlu0 %962, %v785
      %v964 = vpop.permute.xlu0 %963
      %v966 = vmul.f32 %v714, %v789
      %v967 = vmul.f32 %v715, %v794
      %v968 = vmul.f32 %v716, %v799
      %v969 = vmul.f32 %v717, %v804
      %v970 = vmul.f32 %v718, %v809
      %v971 = vmul.f32 %v719, %v814
      %v972 = vmul.f32 %v720, %v819
      %v973 = vmul.f32 %v721, %v824
      %v974 = vmul.f32 %v722, %v829
      %v975 = vmul.f32 %v723, %v834
      %v976 = vmul.f32 %v724, %v839
      %v977 = vmul.f32 %v725, %v844
      %v978 = vmul.f32 %v726, %v849
      %v979 = vmul.f32 %v727, %v854
      %v980 = vmul.f32 %v728, %v859
      %v981 = vmul.f32 %v729, %v864
      %v982 = vmul.f32 %v730, %v869
      %v983 = vmul.f32 %v731, %v874
      %v984 = vmul.f32 %v732, %v879
      %v985 = vmul.f32 %v733, %v884
      %v986 = vmul.f32 %v734, %v889
      %v987 = vmul.f32 %v735, %v894
      %v988 = vmul.f32 %v736, %v899
      %v989 = vmul.f32 %v737, %v904
      %v990 = vmul.f32 %v738, %v909
      %v991 = vmul.f32 %v739, %v914
      %v992 = vmul.f32 %v740, %v919
      %v993 = vmul.f32 %v741, %v924
      %v994 = vmul.f32 %v742, %v929
      %v995 = vmul.f32 %v743, %v934
      %v996 = vmul.f32 %v744, %v939
      %v997 = vmul.f32 %v745, %v944
      %v998 = vmul.f32 %v746, %v949
      %v999 = vmul.f32 %v747, %v954
      %v1000 = vmul.f32 %v748, %v959
      %v1001 = vmul.f32 %v749, %v964
      %vm1002 = vcmask 64512
      %1003 = vst.msk [vmem:[#allocation2] sm:$0xff] %vm1002, 0.0
      %1004 = vst.msk [vmem:[#allocation2 + $0x8] sm:$0xff] %vm1002, 0.0
      %1005 = vst.msk [vmem:[#allocation2 + $0x10] sm:$0xff] %vm1002, 0.0
      %1006 = vst.msk [vmem:[#allocation2 + $0x130] sm:$0xff] %vm1002, 0.0
      %1007 = vst.msk [vmem:[#allocation2 + $0x138] sm:$0xff] %vm1002, 0.0
      %1008 = vst.msk [vmem:[#allocation2 + $0x140] sm:$0xff] %vm1002, 0.0
      %1009 = vst.msk [vmem:[#allocation2 + $0x13] sm:$0xff] %vm1002, %v966
      %1010 = vst.msk [vmem:[#allocation2 + $0x1b] sm:$0xff] %vm1002, %v967
      %1011 = vst.msk [vmem:[#allocation2 + $0x23] sm:$0xff] %vm1002, %v968
      %1012 = vst.msk [vmem:[#allocation2 + $0x2b] sm:$0xff] %vm1002, %v969
      %1013 = vst.msk [vmem:[#allocation2 + $0x33] sm:$0xff] %vm1002, %v970
      %1014 = vst.msk [vmem:[#allocation2 + $0x3b] sm:$0xff] %vm1002, %v971
      %1015 = vst.msk [vmem:[#allocation2 + $0x43] sm:$0xff] %vm1002, %v972
      %1016 = vst.msk [vmem:[#allocation2 + $0x4b] sm:$0xff] %vm1002, %v973
      %1017 = vst.msk [vmem:[#allocation2 + $0x53] sm:$0xff] %vm1002, %v974
      %1018 = vst.msk [vmem:[#allocation2 + $0x5b] sm:$0xff] %vm1002, %v975
      %1019 = vst.msk [vmem:[#allocation2 + $0x63] sm:$0xff] %vm1002, %v976
      %1020 = vst.msk [vmem:[#allocation2 + $0x6b] sm:$0xff] %vm1002, %v977
      %1021 = vst.msk [vmem:[#allocation2 + $0x73] sm:$0xff] %vm1002, %v978
      %1022 = vst.msk [vmem:[#allocation2 + $0x7b] sm:$0xff] %vm1002, %v979
      %1023 = vst.msk [vmem:[#allocation2 + $0x83] sm:$0xff] %vm1002, %v980
      %1024 = vst.msk [vmem:[#allocation2 + $0x8b] sm:$0xff] %vm1002, %v981
      %1025 = vst.msk [vmem:[#allocation2 + $0x93] sm:$0xff] %vm1002, %v982
      %1026 = vst.msk [vmem:[#allocation2 + $0x9b] sm:$0xff] %vm1002, %v983
      %1027 = vst.msk [vmem:[#allocation2 + $0xa3] sm:$0xff] %vm1002, %v984
      %1028 = vst.msk [vmem:[#allocation2 + $0xab] sm:$0xff] %vm1002, %v985
      %1029 = vst.msk [vmem:[#allocation2 + $0xb3] sm:$0xff] %vm1002, %v986
      %1030 = vst.msk [vmem:[#allocation2 + $0xbb] sm:$0xff] %vm1002, %v987
      %1031 = vst.msk [vmem:[#allocation2 + $0xc3] sm:$0xff] %vm1002, %v988
      %1032 = vst.msk [vmem:[#allocation2 + $0xcb] sm:$0xff] %vm1002, %v989
      %1033 = vst.msk [vmem:[#allocation2 + $0xd3] sm:$0xff] %vm1002, %v990
      %1034 = vst.msk [vmem:[#allocation2 + $0xdb] sm:$0xff] %vm1002, %v991
      %1035 = vst.msk [vmem:[#allocation2 + $0xe3] sm:$0xff] %vm1002, %v992
      %1036 = vst.msk [vmem:[#allocation2 + $0xeb] sm:$0xff] %vm1002, %v993
      %1037 = vst.msk [vmem:[#allocation2 + $0xf3] sm:$0xff] %vm1002, %v994
      %1038 = vst.msk [vmem:[#allocation2 + $0xfb] sm:$0xff] %vm1002, %v995
      %1039 = vst.msk [vmem:[#allocation2 + $0x103] sm:$0xff] %vm1002, %v996
      %1040 = vst.msk [vmem:[#allocation2 + $0x10b] sm:$0xff] %vm1002, %v997
      %1041 = vst.msk [vmem:[#allocation2 + $0x113] sm:$0xff] %vm1002, %v998
      %1042 = vst.msk [vmem:[#allocation2 + $0x11b] sm:$0xff] %vm1002, %v999
      %1043 = vst.msk [vmem:[#allocation2 + $0x123] sm:$0xff] %vm1002, %v1000
      %1044 = vst.msk [vmem:[#allocation2 + $0x12b] sm:$0xff] %vm1002, %v1001
      %v1045 = vld [vmem:[#allocation2] sm:$0xff]
      %v1046 = vld [vmem:[#allocation2 + $0x8] sm:$0xff]
      %v1047 = vld [vmem:[#allocation2 + $0x10] sm:$0xff]
      %v1048 = vld [vmem:[#allocation2 + $0x18] sm:$0xff]
      %v1049 = vld [vmem:[#allocation2 + $0x20] sm:$0xff]
      %v1050 = vld [vmem:[#allocation2 + $0x28] sm:$0xff]
      %v1051 = vld [vmem:[#allocation2 + $0x30] sm:$0xff]
      %v1052 = vld [vmem:[#allocation2 + $0x38] sm:$0xff]
      %v1053 = vld [vmem:[#allocation2 + $0x40] sm:$0xff]
      %v1054 = vld [vmem:[#allocation2 + $0x48] sm:$0xff]
      %v1055 = vld [vmem:[#allocation2 + $0x50] sm:$0xff]
      %v1056 = vld [vmem:[#allocation2 + $0x58] sm:$0xff]
      %v1057 = vld [vmem:[#allocation2 + $0x60] sm:$0xff]
      %v1058 = vld [vmem:[#allocation2 + $0x68] sm:$0xff]
      %v1059 = vld [vmem:[#allocation2 + $0x70] sm:$0xff]
      %v1060 = vld [vmem:[#allocation2 + $0x78] sm:$0xff]
      %v1061 = vld [vmem:[#allocation2 + $0x80] sm:$0xff]
      %v1062 = vld [vmem:[#allocation2 + $0x88] sm:$0xff]
      %v1063 = vld [vmem:[#allocation2 + $0x90] sm:$0xff]
      %v1064 = vld [vmem:[#allocation2 + $0x98] sm:$0xff]
      %v1065 = vld [vmem:[#allocation2 + $0xa0] sm:$0xff]
      %v1066 = vld [vmem:[#allocation2 + $0xa8] sm:$0xff]
      %v1067 = vld [vmem:[#allocation2 + $0xb0] sm:$0xff]
      %v1068 = vld [vmem:[#allocation2 + $0xb8] sm:$0xff]
      %v1069 = vld [vmem:[#allocation2 + $0xc0] sm:$0xff]
      %v1070 = vld [vmem:[#allocation2 + $0xc8] sm:$0xff]
      %v1071 = vld [vmem:[#allocation2 + $0xd0] sm:$0xff]
      %v1072 = vld [vmem:[#allocation2 + $0xd8] sm:$0xff]
      %v1073 = vld [vmem:[#allocation2 + $0xe0] sm:$0xff]
      %v1074 = vld [vmem:[#allocation2 + $0xe8] sm:$0xff]
      %v1075 = vld [vmem:[#allocation2 + $0xf0] sm:$0xff]
      %v1076 = vld [vmem:[#allocation2 + $0xf8] sm:$0xff]
      %v1077 = vld [vmem:[#allocation2 + $0x100] sm:$0xff]
      %v1078 = vld [vmem:[#allocation2 + $0x108] sm:$0xff]
      %v1079 = vld [vmem:[#allocation2 + $0x110] sm:$0xff]
      %v1080 = vld [vmem:[#allocation2 + $0x118] sm:$0xff]
      %v1081 = vld [vmem:[#allocation2 + $0x1] sm:$0xff]
      %v1082 = vld [vmem:[#allocation2 + $0x9] sm:$0xff]
      %v1083 = vld [vmem:[#allocation2 + $0x11] sm:$0xff]
      %v1084 = vld [vmem:[#allocation2 + $0x19] sm:$0xff]
      %v1085 = vld [vmem:[#allocation2 + $0x21] sm:$0xff]
      %v1086 = vld [vmem:[#allocation2 + $0x29] sm:$0xff]
      %v1087 = vld [vmem:[#allocation2 + $0x31] sm:$0xff]
      %v1088 = vld [vmem:[#allocation2 + $0x39] sm:$0xff]
      %v1089 = vld [vmem:[#allocation2 + $0x41] sm:$0xff]
      %v1090 = vld [vmem:[#allocation2 + $0x49] sm:$0xff]
      %v1091 = vld [vmem:[#allocation2 + $0x51] sm:$0xff]
      %v1092 = vld [vmem:[#allocation2 + $0x59] sm:$0xff]
      %v1093 = vld [vmem:[#allocation2 + $0x61] sm:$0xff]
      %v1094 = vld [vmem:[#allocation2 + $0x69] sm:$0xff]
      %v1095 = vld [vmem:[#allocation2 + $0x71] sm:$0xff]
      %v1096 = vld [vmem:[#allocation2 + $0x79] sm:$0xff]
      %v1097 = vld [vmem:[#allocation2 + $0x81] sm:$0xff]
      %v1098 = vld [vmem:[#allocation2 + $0x89] sm:$0xff]
      %v1099 = vld [vmem:[#allocation2 + $0x91] sm:$0xff]
      %v1100 = vld [vmem:[#allocation2 + $0x99] sm:$0xff]
      %v1101 = vld [vmem:[#allocation2 + $0xa1] sm:$0xff]
      %v1102 = vld [vmem:[#allocation2 + $0xa9] sm:$0xff]
      %v1103 = vld [vmem:[#allocation2 + $0xb1] sm:$0xff]
      %v1104 = vld [vmem:[#allocation2 + $0xb9] sm:$0xff]
      %v1105 = vld [vmem:[#allocation2 + $0xc1] sm:$0xff]
      %v1106 = vld [vmem:[#allocation2 + $0xc9] sm:$0xff]
      %v1107 = vld [vmem:[#allocation2 + $0xd1] sm:$0xff]
      %v1108 = vld [vmem:[#allocation2 + $0xd9] sm:$0xff]
      %v1109 = vld [vmem:[#allocation2 + $0xe1] sm:$0xff]
      %v1110 = vld [vmem:[#allocation2 + $0xe9] sm:$0xff]
      %v1111 = vld [vmem:[#allocation2 + $0xf1] sm:$0xff]
      %v1112 = vld [vmem:[#allocation2 + $0xf9] sm:$0xff]
      %v1113 = vld [vmem:[#allocation2 + $0x101] sm:$0xff]
      %v1114 = vld [vmem:[#allocation2 + $0x109] sm:$0xff]
      %v1115 = vld [vmem:[#allocation2 + $0x111] sm:$0xff]
      %v1116 = vld [vmem:[#allocation2 + $0x119] sm:$0xff]
      %v1117 = vld [vmem:[#allocation2 + $0x2] sm:$0xff]
      %v1118 = vld [vmem:[#allocation2 + $0xa] sm:$0xff]
      %v1119 = vld [vmem:[#allocation2 + $0x12] sm:$0xff]
      %v1120 = vld [vmem:[#allocation2 + $0x1a] sm:$0xff]
      %v1121 = vld [vmem:[#allocation2 + $0x22] sm:$0xff]
      %v1122 = vld [vmem:[#allocation2 + $0x2a] sm:$0xff]
      %v1123 = vld [vmem:[#allocation2 + $0x32] sm:$0xff]
      %v1124 = vld [vmem:[#allocation2 + $0x3a] sm:$0xff]
      %v1125 = vld [vmem:[#allocation2 + $0x42] sm:$0xff]
      %v1126 = vld [vmem:[#allocation2 + $0x4a] sm:$0xff]
      %v1127 = vld [vmem:[#allocation2 + $0x52] sm:$0xff]
      %v1128 = vld [vmem:[#allocation2 + $0x5a] sm:$0xff]
      %v1129 = vld [vmem:[#allocation2 + $0x62] sm:$0xff]
      %v1130 = vld [vmem:[#allocation2 + $0x6a] sm:$0xff]
      %v1131 = vld [vmem:[#allocation2 + $0x72] sm:$0xff]
      %v1132 = vld [vmem:[#allocation2 + $0x7a] sm:$0xff]
      %v1133 = vld [vmem:[#allocation2 + $0x82] sm:$0xff]
      %v1134 = vld [vmem:[#allocation2 + $0x8a] sm:$0xff]
      %v1135 = vld [vmem:[#allocation2 + $0x92] sm:$0xff]
      %v1136 = vld [vmem:[#allocation2 + $0x9a] sm:$0xff]
      %v1137 = vld [vmem:[#allocation2 + $0xa2] sm:$0xff]
      %v1138 = vld [vmem:[#allocation2 + $0xaa] sm:$0xff]
      %v1139 = vld [vmem:[#allocation2 + $0xb2] sm:$0xff]
      %v1140 = vld [vmem:[#allocation2 + $0xba] sm:$0xff]
      %v1141 = vld [vmem:[#allocation2 + $0xc2] sm:$0xff]
      %v1142 = vld [vmem:[#allocation2 + $0xca] sm:$0xff]
      %v1143 = vld [vmem:[#allocation2 + $0xd2] sm:$0xff]
      %v1144 = vld [vmem:[#allocation2 + $0xda] sm:$0xff]
      %v1145 = vld [vmem:[#allocation2 + $0xe2] sm:$0xff]
      %v1146 = vld [vmem:[#allocation2 + $0xea] sm:$0xff]
      %v1147 = vld [vmem:[#allocation2 + $0xf2] sm:$0xff]
      %v1148 = vld [vmem:[#allocation2 + $0xfa] sm:$0xff]
      %v1149 = vld [vmem:[#allocation2 + $0x102] sm:$0xff]
      %v1150 = vld [vmem:[#allocation2 + $0x10a] sm:$0xff]
      %v1151 = vld [vmem:[#allocation2 + $0x112] sm:$0xff]
      %v1152 = vld [vmem:[#allocation2 + $0x11a] sm:$0xff]
      %v1153 = vld [vmem:[#allocation2 + $0x122] sm:$0xff]
      %v1154 = vld [vmem:[#allocation2 + $0x12a] sm:$0xff]
      %v1155 = vld [vmem:[#allocation2 + $0x13] sm:$0xff]
      %v1156 = vld [vmem:[#allocation2 + $0x1b] sm:$0xff]
      %v1157 = vld [vmem:[#allocation2 + $0x23] sm:$0xff]
      %v1158 = vld [vmem:[#allocation2 + $0x2b] sm:$0xff]
      %v1159 = vld [vmem:[#allocation2 + $0x33] sm:$0xff]
      %v1160 = vld [vmem:[#allocation2 + $0x3b] sm:$0xff]
      %v1161 = vld [vmem:[#allocation2 + $0x43] sm:$0xff]
      %v1162 = vld [vmem:[#allocation2 + $0x4b] sm:$0xff]
      %v1163 = vld [vmem:[#allocation2 + $0x53] sm:$0xff]
      %v1164 = vld [vmem:[#allocation2 + $0x5b] sm:$0xff]
      %v1165 = vld [vmem:[#allocation2 + $0x63] sm:$0xff]
      %v1166 = vld [vmem:[#allocation2 + $0x6b] sm:$0xff]
      %v1167 = vld [vmem:[#allocation2 + $0x73] sm:$0xff]
      %v1168 = vld [vmem:[#allocation2 + $0x7b] sm:$0xff]
      %v1169 = vld [vmem:[#allocation2 + $0x83] sm:$0xff]
      %v1170 = vld [vmem:[#allocation2 + $0x8b] sm:$0xff]
      %v1171 = vld [vmem:[#allocation2 + $0x93] sm:$0xff]
      %v1172 = vld [vmem:[#allocation2 + $0x9b] sm:$0xff]
      %v1173 = vld [vmem:[#allocation2 + $0xa3] sm:$0xff]
      %v1174 = vld [vmem:[#allocation2 + $0xab] sm:$0xff]
      %v1175 = vld [vmem:[#allocation2 + $0xb3] sm:$0xff]
      %v1176 = vld [vmem:[#allocation2 + $0xbb] sm:$0xff]
      %v1177 = vld [vmem:[#allocation2 + $0xc3] sm:$0xff]
      %v1178 = vld [vmem:[#allocation2 + $0xcb] sm:$0xff]
      %v1179 = vld [vmem:[#allocation2 + $0xd3] sm:$0xff]
      %v1180 = vld [vmem:[#allocation2 + $0xdb] sm:$0xff]
      %v1181 = vld [vmem:[#allocation2 + $0xe3] sm:$0xff]
      %v1182 = vld [vmem:[#allocation2 + $0xeb] sm:$0xff]
      %v1183 = vld [vmem:[#allocation2 + $0xf3] sm:$0xff]
      %v1184 = vld [vmem:[#allocation2 + $0xfb] sm:$0xff]
      %v1185 = vld [vmem:[#allocation2 + $0x103] sm:$0xff]
      %v1186 = vld [vmem:[#allocation2 + $0x10b] sm:$0xff]
      %v1187 = vld [vmem:[#allocation2 + $0x113] sm:$0xff]
      %v1188 = vld [vmem:[#allocation2 + $0x11b] sm:$0xff]
      %v1189 = vld [vmem:[#allocation2 + $0x123] sm:$0xff]
      %v1190 = vld [vmem:[#allocation2 + $0x12b] sm:$0xff]
      %v1191 = vld [vmem:[#allocation2 + $0x14] sm:$0xff]
      %v1192 = vld [vmem:[#allocation2 + $0x1c] sm:$0xff]
      %v1193 = vld [vmem:[#allocation2 + $0x24] sm:$0xff]
      %v1194 = vld [vmem:[#allocation2 + $0x2c] sm:$0xff]
      %v1195 = vld [vmem:[#allocation2 + $0x34] sm:$0xff]
      %v1196 = vld [vmem:[#allocation2 + $0x3c] sm:$0xff]
      %v1197 = vld [vmem:[#allocation2 + $0x44] sm:$0xff]
      %v1198 = vld [vmem:[#allocation2 + $0x4c] sm:$0xff]
      %v1199 = vld [vmem:[#allocation2 + $0x54] sm:$0xff]
      %v1200 = vld [vmem:[#allocation2 + $0x5c] sm:$0xff]
      %v1201 = vld [vmem:[#allocation2 + $0x64] sm:$0xff]
      %v1202 = vld [vmem:[#allocation2 + $0x6c] sm:$0xff]
      %v1203 = vld [vmem:[#allocation2 + $0x74] sm:$0xff]
      %v1204 = vld [vmem:[#allocation2 + $0x7c] sm:$0xff]
      %v1205 = vld [vmem:[#allocation2 + $0x84] sm:$0xff]
      %v1206 = vld [vmem:[#allocation2 + $0x8c] sm:$0xff]
      %v1207 = vld [vmem:[#allocation2 + $0x94] sm:$0xff]
      %v1208 = vld [vmem:[#allocation2 + $0x9c] sm:$0xff]
      %v1209 = vld [vmem:[#allocation2 + $0xa4] sm:$0xff]
      %v1210 = vld [vmem:[#allocation2 + $0xac] sm:$0xff]
      %v1211 = vld [vmem:[#allocation2 + $0xb4] sm:$0xff]
      %v1212 = vld [vmem:[#allocation2 + $0xbc] sm:$0xff]
      %v1213 = vld [vmem:[#allocation2 + $0xc4] sm:$0xff]
      %v1214 = vld [vmem:[#allocation2 + $0xcc] sm:$0xff]
      %v1215 = vld [vmem:[#allocation2 + $0xd4] sm:$0xff]
      %v1216 = vld [vmem:[#allocation2 + $0xdc] sm:$0xff]
      %v1217 = vld [vmem:[#allocation2 + $0xe4] sm:$0xff]
      %v1218 = vld [vmem:[#allocation2 + $0xec] sm:$0xff]
      %v1219 = vld [vmem:[#allocation2 + $0xf4] sm:$0xff]
      %v1220 = vld [vmem:[#allocation2 + $0xfc] sm:$0xff]
      %v1221 = vld [vmem:[#allocation2 + $0x104] sm:$0xff]
      %v1222 = vld [vmem:[#allocation2 + $0x10c] sm:$0xff]
      %v1223 = vld [vmem:[#allocation2 + $0x114] sm:$0xff]
      %v1224 = vld [vmem:[#allocation2 + $0x11c] sm:$0xff]
      %v1225 = vld [vmem:[#allocation2 + $0x124] sm:$0xff]
      %v1226 = vld [vmem:[#allocation2 + $0x12c] sm:$0xff]
      %v1227 = vld [vmem:[#allocation2 + $0x134] sm:$0xff]
      %v1228 = vld [vmem:[#allocation2 + $0x13c] sm:$0xff]
      %v1229 = vld [vmem:[#allocation2 + $0x25] sm:$0xff]
      %v1230 = vld [vmem:[#allocation2 + $0x2d] sm:$0xff]
      %v1231 = vld [vmem:[#allocation2 + $0x35] sm:$0xff]
      %v1232 = vld [vmem:[#allocation2 + $0x3d] sm:$0xff]
      %v1233 = vld [vmem:[#allocation2 + $0x45] sm:$0xff]
      %v1234 = vld [vmem:[#allocation2 + $0x4d] sm:$0xff]
      %v1235 = vld [vmem:[#allocation2 + $0x55] sm:$0xff]
      %v1236 = vld [vmem:[#allocation2 + $0x5d] sm:$0xff]
      %v1237 = vld [vmem:[#allocation2 + $0x65] sm:$0xff]
      %v1238 = vld [vmem:[#allocation2 + $0x6d] sm:$0xff]
      %v1239 = vld [vmem:[#allocation2 + $0x75] sm:$0xff]
      %v1240 = vld [vmem:[#allocation2 + $0x7d] sm:$0xff]
      %v1241 = vld [vmem:[#allocation2 + $0x85] sm:$0xff]
      %v1242 = vld [vmem:[#allocation2 + $0x8d] sm:$0xff]
      %v1243 = vld [vmem:[#allocation2 + $0x95] sm:$0xff]
      %v1244 = vld [vmem:[#allocation2 + $0x9d] sm:$0xff]
      %v1245 = vld [vmem:[#allocation2 + $0xa5] sm:$0xff]
      %v1246 = vld [vmem:[#allocation2 + $0xad] sm:$0xff]
      %v1247 = vld [vmem:[#allocation2 + $0xb5] sm:$0xff]
      %v1248 = vld [vmem:[#allocation2 + $0xbd] sm:$0xff]
      %v1249 = vld [vmem:[#allocation2 + $0xc5] sm:$0xff]
      %v1250 = vld [vmem:[#allocation2 + $0xcd] sm:$0xff]
      %v1251 = vld [vmem:[#allocation2 + $0xd5] sm:$0xff]
      %v1252 = vld [vmem:[#allocation2 + $0xdd] sm:$0xff]
      %v1253 = vld [vmem:[#allocation2 + $0xe5] sm:$0xff]
      %v1254 = vld [vmem:[#allocation2 + $0xed] sm:$0xff]
      %v1255 = vld [vmem:[#allocation2 + $0xf5] sm:$0xff]
      %v1256 = vld [vmem:[#allocation2 + $0xfd] sm:$0xff]
      %v1257 = vld [vmem:[#allocation2 + $0x105] sm:$0xff]
      %v1258 = vld [vmem:[#allocation2 + $0x10d] sm:$0xff]
      %v1259 = vld [vmem:[#allocation2 + $0x115] sm:$0xff]
      %v1260 = vld [vmem:[#allocation2 + $0x11d] sm:$0xff]
      %v1261 = vld [vmem:[#allocation2 + $0x125] sm:$0xff]
      %v1262 = vld [vmem:[#allocation2 + $0x12d] sm:$0xff]
      %v1263 = vld [vmem:[#allocation2 + $0x135] sm:$0xff]
      %v1264 = vld [vmem:[#allocation2 + $0x13d] sm:$0xff]
      %v1265 = vld [vmem:[#allocation2 + $0x26] sm:$0xff]
      %v1266 = vld [vmem:[#allocation2 + $0x2e] sm:$0xff]
      %v1267 = vld [vmem:[#allocation2 + $0x36] sm:$0xff]
      %v1268 = vld [vmem:[#allocation2 + $0x3e] sm:$0xff]
      %v1269 = vld [vmem:[#allocation2 + $0x46] sm:$0xff]
      %v1270 = vld [vmem:[#allocation2 + $0x4e] sm:$0xff]
      %v1271 = vld [vmem:[#allocation2 + $0x56] sm:$0xff]
      %v1272 = vld [vmem:[#allocation2 + $0x5e] sm:$0xff]
      %v1273 = vld [vmem:[#allocation2 + $0x66] sm:$0xff]
      %v1274 = vld [vmem:[#allocation2 + $0x6e] sm:$0xff]
      %v1275 = vld [vmem:[#allocation2 + $0x76] sm:$0xff]
      %v1276 = vld [vmem:[#allocation2 + $0x7e] sm:$0xff]
      %v1277 = vld [vmem:[#allocation2 + $0x86] sm:$0xff]
      %v1278 = vld [vmem:[#allocation2 + $0x8e] sm:$0xff]
      %v1279 = vld [vmem:[#allocation2 + $0x96] sm:$0xff]
      %v1280 = vld [vmem:[#allocation2 + $0x9e] sm:$0xff]
      %v1281 = vld [vmem:[#allocation2 + $0xa6] sm:$0xff]
      %v1282 = vld [vmem:[#allocation2 + $0xae] sm:$0xff]
      %v1283 = vld [vmem:[#allocation2 + $0xb6] sm:$0xff]
      %v1284 = vld [vmem:[#allocation2 + $0xbe] sm:$0xff]
      %v1285 = vld [vmem:[#allocation2 + $0xc6] sm:$0xff]
      %v1286 = vld [vmem:[#allocation2 + $0xce] sm:$0xff]
      %v1287 = vld [vmem:[#allocation2 + $0xd6] sm:$0xff]
      %v1288 = vld [vmem:[#allocation2 + $0xde] sm:$0xff]
      %v1289 = vld [vmem:[#allocation2 + $0xe6] sm:$0xff]
      %v1290 = vld [vmem:[#allocation2 + $0xee] sm:$0xff]
      %v1291 = vld [vmem:[#allocation2 + $0xf6] sm:$0xff]
      %v1292 = vld [vmem:[#allocation2 + $0xfe] sm:$0xff]
      %v1293 = vld [vmem:[#allocation2 + $0x106] sm:$0xff]
      %v1294 = vld [vmem:[#allocation2 + $0x10e] sm:$0xff]
      %v1295 = vld [vmem:[#allocation2 + $0x116] sm:$0xff]
      %v1296 = vld [vmem:[#allocation2 + $0x11e] sm:$0xff]
      %v1297 = vld [vmem:[#allocation2 + $0x126] sm:$0xff]
      %v1298 = vld [vmem:[#allocation2 + $0x12e] sm:$0xff]
      %v1299 = vld [vmem:[#allocation2 + $0x136] sm:$0xff]
      %v1300 = vld [vmem:[#allocation2 + $0x13e] sm:$0xff]
      %1337 = vrot.lane.b32.xlu0 %v1081, 8
      %v1338 = vpop.permute.xlu0 %1337
      %1339 = vrot.lane.b32.xlu0 %v1082, 8
      %v1340 = vpop.permute.xlu0 %1339
      %1341 = vrot.lane.b32.xlu0 %v1083, 8
      %v1342 = vpop.permute.xlu0 %1341
      %1343 = vrot.lane.b32.xlu0 %v1084, 8
      %v1344 = vpop.permute.xlu0 %1343
      %1345 = vrot.lane.b32.xlu0 %v1085, 8
      %v1346 = vpop.permute.xlu0 %1345
      %1347 = vrot.lane.b32.xlu0 %v1086, 8
      %v1348 = vpop.permute.xlu0 %1347
      %1349 = vrot.lane.b32.xlu0 %v1087, 8
      %v1350 = vpop.permute.xlu0 %1349
      %1351 = vrot.lane.b32.xlu0 %v1088, 8
      %v1352 = vpop.permute.xlu0 %1351
      %1353 = vrot.lane.b32.xlu0 %v1089, 8
      %v1354 = vpop.permute.xlu0 %1353
      %1355 = vrot.lane.b32.xlu0 %v1090, 8
      %v1356 = vpop.permute.xlu0 %1355
      %1357 = vrot.lane.b32.xlu0 %v1091, 8
      %v1358 = vpop.permute.xlu0 %1357
      %1359 = vrot.lane.b32.xlu0 %v1092, 8
      %v1360 = vpop.permute.xlu0 %1359
      %1361 = vrot.lane.b32.xlu0 %v1093, 8
      %v1362 = vpop.permute.xlu0 %1361
      %1363 = vrot.lane.b32.xlu0 %v1094, 8
      %v1364 = vpop.permute.xlu0 %1363
      %1365 = vrot.lane.b32.xlu0 %v1095, 8
      %v1366 = vpop.permute.xlu0 %1365
      %1367 = vrot.lane.b32.xlu0 %v1096, 8
      %v1368 = vpop.permute.xlu0 %1367
      %1369 = vrot.lane.b32.xlu0 %v1097, 8
      %v1370 = vpop.permute.xlu0 %1369
      %1371 = vrot.lane.b32.xlu0 %v1098, 8
      %v1372 = vpop.permute.xlu0 %1371
      %1373 = vrot.lane.b32.xlu0 %v1099, 8
      %v1374 = vpop.permute.xlu0 %1373
      %1375 = vrot.lane.b32.xlu0 %v1100, 8
      %v1376 = vpop.permute.xlu0 %1375
      %1377 = vrot.lane.b32.xlu0 %v1101, 8
      %v1378 = vpop.permute.xlu0 %1377
      %1379 = vrot.lane.b32.xlu0 %v1102, 8
      %v1380 = vpop.permute.xlu0 %1379
      %1381 = vrot.lane.b32.xlu0 %v1103, 8
      %v1382 = vpop.permute.xlu0 %1381
      %1383 = vrot.lane.b32.xlu0 %v1104, 8
      %v1384 = vpop.permute.xlu0 %1383
      %1385 = vrot.lane.b32.xlu0 %v1105, 8
      %v1386 = vpop.permute.xlu0 %1385
      %1387 = vrot.lane.b32.xlu0 %v1106, 8
      %v1388 = vpop.permute.xlu0 %1387
      %1389 = vrot.lane.b32.xlu0 %v1107, 8
      %v1390 = vpop.permute.xlu0 %1389
      %1391 = vrot.lane.b32.xlu0 %v1108, 8
      %v1392 = vpop.permute.xlu0 %1391
      %1393 = vrot.lane.b32.xlu0 %v1109, 8
      %v1394 = vpop.permute.xlu0 %1393
      %1395 = vrot.lane.b32.xlu0 %v1110, 8
      %v1396 = vpop.permute.xlu0 %1395
      %1397 = vrot.lane.b32.xlu0 %v1111, 8
      %v1398 = vpop.permute.xlu0 %1397
      %1399 = vrot.lane.b32.xlu0 %v1112, 8
      %v1400 = vpop.permute.xlu0 %1399
      %1401 = vrot.lane.b32.xlu0 %v1113, 8
      %v1402 = vpop.permute.xlu0 %1401
      %1403 = vrot.lane.b32.xlu0 %v1114, 8
      %v1404 = vpop.permute.xlu0 %1403
      %1405 = vrot.lane.b32.xlu0 %v1115, 8
      %v1406 = vpop.permute.xlu0 %1405
      %1407 = vrot.lane.b32.xlu0 %v1116, 8
      %v1408 = vpop.permute.xlu0 %1407
      %1481 = vrot.lane.b32.xlu0 %v1117, 16
      %v1482 = vpop.permute.xlu0 %1481
      %1483 = vrot.lane.b32.xlu0 %v1118, 16
      %v1484 = vpop.permute.xlu0 %1483
      %1485 = vrot.lane.b32.xlu0 %v1119, 16
      %v1486 = vpop.permute.xlu0 %1485
      %1487 = vrot.lane.b32.xlu0 %v1120, 16
      %v1488 = vpop.permute.xlu0 %1487
      %1489 = vrot.lane.b32.xlu0 %v1121, 16
      %v1490 = vpop.permute.xlu0 %1489
      %1491 = vrot.lane.b32.xlu0 %v1122, 16
      %v1492 = vpop.permute.xlu0 %1491
      %1493 = vrot.lane.b32.xlu0 %v1123, 16
      %v1494 = vpop.permute.xlu0 %1493
      %1495 = vrot.lane.b32.xlu0 %v1124, 16
      %v1496 = vpop.permute.xlu0 %1495
      %1497 = vrot.lane.b32.xlu0 %v1125, 16
      %v1498 = vpop.permute.xlu0 %1497
      %1499 = vrot.lane.b32.xlu0 %v1126, 16
      %v1500 = vpop.permute.xlu0 %1499
      %1501 = vrot.lane.b32.xlu0 %v1127, 16
      %v1502 = vpop.permute.xlu0 %1501
      %1503 = vrot.lane.b32.xlu0 %v1128, 16
      %v1504 = vpop.permute.xlu0 %1503
      %1505 = vrot.lane.b32.xlu0 %v1129, 16
      %v1506 = vpop.permute.xlu0 %1505
      %1507 = vrot.lane.b32.xlu0 %v1130, 16
      %v1508 = vpop.permute.xlu0 %1507
      %1509 = vrot.lane.b32.xlu0 %v1131, 16
      %v1510 = vpop.permute.xlu0 %1509
      %1511 = vrot.lane.b32.xlu0 %v1132, 16
      %v1512 = vpop.permute.xlu0 %1511
      %1513 = vrot.lane.b32.xlu0 %v1133, 16
      %v1514 = vpop.permute.xlu0 %1513
      %1515 = vrot.lane.b32.xlu0 %v1134, 16
      %v1516 = vpop.permute.xlu0 %1515
      %1517 = vrot.lane.b32.xlu0 %v1135, 16
      %v1518 = vpop.permute.xlu0 %1517
      %1519 = vrot.lane.b32.xlu0 %v1136, 16
      %v1520 = vpop.permute.xlu0 %1519
      %1521 = vrot.lane.b32.xlu0 %v1137, 16
      %v1522 = vpop.permute.xlu0 %1521
      %1523 = vrot.lane.b32.xlu0 %v1138, 16
      %v1524 = vpop.permute.xlu0 %1523
      %1525 = vrot.lane.b32.xlu0 %v1139, 16
      %v1526 = vpop.permute.xlu0 %1525
      %1527 = vrot.lane.b32.xlu0 %v1140, 16
      %v1528 = vpop.permute.xlu0 %1527
      %1529 = vrot.lane.b32.xlu0 %v1141, 16
      %v1530 = vpop.permute.xlu0 %1529
      %1531 = vrot.lane.b32.xlu0 %v1142, 16
      %v1532 = vpop.permute.xlu0 %1531
      %1533 = vrot.lane.b32.xlu0 %v1143, 16
      %v1534 = vpop.permute.xlu0 %1533
      %1535 = vrot.lane.b32.xlu0 %v1144, 16
      %v1536 = vpop.permute.xlu0 %1535
      %1537 = vrot.lane.b32.xlu0 %v1145, 16
      %v1538 = vpop.permute.xlu0 %1537
      %1539 = vrot.lane.b32.xlu0 %v1146, 16
      %v1540 = vpop.permute.xlu0 %1539
      %1541 = vrot.lane.b32.xlu0 %v1147, 16
      %v1542 = vpop.permute.xlu0 %1541
      %1543 = vrot.lane.b32.xlu0 %v1148, 16
      %v1544 = vpop.permute.xlu0 %1543
      %1545 = vrot.lane.b32.xlu0 %v1149, 16
      %v1546 = vpop.permute.xlu0 %1545
      %1547 = vrot.lane.b32.xlu0 %v1150, 16
      %v1548 = vpop.permute.xlu0 %1547
      %1549 = vrot.lane.b32.xlu0 %v1151, 16
      %v1550 = vpop.permute.xlu0 %1549
      %1551 = vrot.lane.b32.xlu0 %v1152, 16
      %v1552 = vpop.permute.xlu0 %1551
      %1591 = vrot.lane.b32.xlu0 %v1119, 24
      %v1592 = vpop.permute.xlu0 %1591
      %1593 = vrot.lane.b32.xlu0 %v1120, 24
      %v1594 = vpop.permute.xlu0 %1593
      %1595 = vrot.lane.b32.xlu0 %v1121, 24
      %v1596 = vpop.permute.xlu0 %1595
      %1597 = vrot.lane.b32.xlu0 %v1122, 24
      %v1598 = vpop.permute.xlu0 %1597
      %1599 = vrot.lane.b32.xlu0 %v1123, 24
      %v1600 = vpop.permute.xlu0 %1599
      %1601 = vrot.lane.b32.xlu0 %v1124, 24
      %v1602 = vpop.permute.xlu0 %1601
      %1603 = vrot.lane.b32.xlu0 %v1125, 24
      %v1604 = vpop.permute.xlu0 %1603
      %1605 = vrot.lane.b32.xlu0 %v1126, 24
      %v1606 = vpop.permute.xlu0 %1605
      %1607 = vrot.lane.b32.xlu0 %v1127, 24
      %v1608 = vpop.permute.xlu0 %1607
      %1609 = vrot.lane.b32.xlu0 %v1128, 24
      %v1610 = vpop.permute.xlu0 %1609
      %1611 = vrot.lane.b32.xlu0 %v1129, 24
      %v1612 = vpop.permute.xlu0 %1611
      %1613 = vrot.lane.b32.xlu0 %v1130, 24
      %v1614 = vpop.permute.xlu0 %1613
      %1615 = vrot.lane.b32.xlu0 %v1131, 24
      %v1616 = vpop.permute.xlu0 %1615
      %1617 = vrot.lane.b32.xlu0 %v1132, 24
      %v1618 = vpop.permute.xlu0 %1617
      %1619 = vrot.lane.b32.xlu0 %v1133, 24
      %v1620 = vpop.permute.xlu0 %1619
      %1621 = vrot.lane.b32.xlu0 %v1134, 24
      %v1622 = vpop.permute.xlu0 %1621
      %1623 = vrot.lane.b32.xlu0 %v1135, 24
      %v1624 = vpop.permute.xlu0 %1623
      %1625 = vrot.lane.b32.xlu0 %v1136, 24
      %v1626 = vpop.permute.xlu0 %1625
      %1627 = vrot.lane.b32.xlu0 %v1137, 24
      %v1628 = vpop.permute.xlu0 %1627
      %1629 = vrot.lane.b32.xlu0 %v1138, 24
      %v1630 = vpop.permute.xlu0 %1629
      %1631 = vrot.lane.b32.xlu0 %v1139, 24
      %v1632 = vpop.permute.xlu0 %1631
      %1633 = vrot.lane.b32.xlu0 %v1140, 24
      %v1634 = vpop.permute.xlu0 %1633
      %1635 = vrot.lane.b32.xlu0 %v1141, 24
      %v1636 = vpop.permute.xlu0 %1635
      %1637 = vrot.lane.b32.xlu0 %v1142, 24
      %v1638 = vpop.permute.xlu0 %1637
      %1639 = vrot.lane.b32.xlu0 %v1143, 24
      %v1640 = vpop.permute.xlu0 %1639
      %1641 = vrot.lane.b32.xlu0 %v1144, 24
      %v1642 = vpop.permute.xlu0 %1641
      %1643 = vrot.lane.b32.xlu0 %v1145, 24
      %v1644 = vpop.permute.xlu0 %1643
      %1645 = vrot.lane.b32.xlu0 %v1146, 24
      %v1646 = vpop.permute.xlu0 %1645
      %1647 = vrot.lane.b32.xlu0 %v1147, 24
      %v1648 = vpop.permute.xlu0 %1647
      %1649 = vrot.lane.b32.xlu0 %v1148, 24
      %v1650 = vpop.permute.xlu0 %1649
      %1651 = vrot.lane.b32.xlu0 %v1149, 24
      %v1652 = vpop.permute.xlu0 %1651
      %1653 = vrot.lane.b32.xlu0 %v1150, 24
      %v1654 = vpop.permute.xlu0 %1653
      %1655 = vrot.lane.b32.xlu0 %v1151, 24
      %v1656 = vpop.permute.xlu0 %1655
      %1657 = vrot.lane.b32.xlu0 %v1152, 24
      %v1658 = vpop.permute.xlu0 %1657
      %1659 = vrot.lane.b32.xlu0 %v1153, 24
      %v1660 = vpop.permute.xlu0 %1659
      %1661 = vrot.lane.b32.xlu0 %v1154, 24
      %v1662 = vpop.permute.xlu0 %1661
      %1735 = vrot.lane.b32.xlu0 %v1155, 32
      %v1736 = vpop.permute.xlu0 %1735
      %1737 = vrot.lane.b32.xlu0 %v1156, 32
      %v1738 = vpop.permute.xlu0 %1737
      %1739 = vrot.lane.b32.xlu0 %v1157, 32
      %v1740 = vpop.permute.xlu0 %1739
      %1741 = vrot.lane.b32.xlu0 %v1158, 32
      %v1742 = vpop.permute.xlu0 %1741
      %1743 = vrot.lane.b32.xlu0 %v1159, 32
      %v1744 = vpop.permute.xlu0 %1743
      %1745 = vrot.lane.b32.xlu0 %v1160, 32
      %v1746 = vpop.permute.xlu0 %1745
      %1747 = vrot.lane.b32.xlu0 %v1161, 32
      %v1748 = vpop.permute.xlu0 %1747
      %1749 = vrot.lane.b32.xlu0 %v1162, 32
      %v1750 = vpop.permute.xlu0 %1749
      %1751 = vrot.lane.b32.xlu0 %v1163, 32
      %v1752 = vpop.permute.xlu0 %1751
      %1753 = vrot.lane.b32.xlu0 %v1164, 32
      %v1754 = vpop.permute.xlu0 %1753
      %1755 = vrot.lane.b32.xlu0 %v1165, 32
      %v1756 = vpop.permute.xlu0 %1755
      %1757 = vrot.lane.b32.xlu0 %v1166, 32
      %v1758 = vpop.permute.xlu0 %1757
      %1759 = vrot.lane.b32.xlu0 %v1167, 32
      %v1760 = vpop.permute.xlu0 %1759
      %1761 = vrot.lane.b32.xlu0 %v1168, 32
      %v1762 = vpop.permute.xlu0 %1761
      %1763 = vrot.lane.b32.xlu0 %v1169, 32
      %v1764 = vpop.permute.xlu0 %1763
      %1765 = vrot.lane.b32.xlu0 %v1170, 32
      %v1766 = vpop.permute.xlu0 %1765
      %1767 = vrot.lane.b32.xlu0 %v1171, 32
      %v1768 = vpop.permute.xlu0 %1767
      %1769 = vrot.lane.b32.xlu0 %v1172, 32
      %v1770 = vpop.permute.xlu0 %1769
      %1771 = vrot.lane.b32.xlu0 %v1173, 32
      %v1772 = vpop.permute.xlu0 %1771
      %1773 = vrot.lane.b32.xlu0 %v1174, 32
      %v1774 = vpop.permute.xlu0 %1773
      %1775 = vrot.lane.b32.xlu0 %v1175, 32
      %v1776 = vpop.permute.xlu0 %1775
      %1777 = vrot.lane.b32.xlu0 %v1176, 32
      %v1778 = vpop.permute.xlu0 %1777
      %1779 = vrot.lane.b32.xlu0 %v1177, 32
      %v1780 = vpop.permute.xlu0 %1779
      %1781 = vrot.lane.b32.xlu0 %v1178, 32
      %v1782 = vpop.permute.xlu0 %1781
      %1783 = vrot.lane.b32.xlu0 %v1179, 32
      %v1784 = vpop.permute.xlu0 %1783
      %1785 = vrot.lane.b32.xlu0 %v1180, 32
      %v1786 = vpop.permute.xlu0 %1785
      %1787 = vrot.lane.b32.xlu0 %v1181, 32
      %v1788 = vpop.permute.xlu0 %1787
      %1789 = vrot.lane.b32.xlu0 %v1182, 32
      %v1790 = vpop.permute.xlu0 %1789
      %1791 = vrot.lane.b32.xlu0 %v1183, 32
      %v1792 = vpop.permute.xlu0 %1791
      %1793 = vrot.lane.b32.xlu0 %v1184, 32
      %v1794 = vpop.permute.xlu0 %1793
      %1795 = vrot.lane.b32.xlu0 %v1185, 32
      %v1796 = vpop.permute.xlu0 %1795
      %1797 = vrot.lane.b32.xlu0 %v1186, 32
      %v1798 = vpop.permute.xlu0 %1797
      %1799 = vrot.lane.b32.xlu0 %v1187, 32
      %v1800 = vpop.permute.xlu0 %1799
      %1801 = vrot.lane.b32.xlu0 %v1188, 32
      %v1802 = vpop.permute.xlu0 %1801
      %1803 = vrot.lane.b32.xlu0 %v1189, 32
      %v1804 = vpop.permute.xlu0 %1803
      %1805 = vrot.lane.b32.xlu0 %v1190, 32
      %v1806 = vpop.permute.xlu0 %1805
      %1879 = vrot.lane.b32.xlu0 %v1191, 40
      %v1880 = vpop.permute.xlu0 %1879
      %1881 = vrot.lane.b32.xlu0 %v1192, 40
      %v1882 = vpop.permute.xlu0 %1881
      %1883 = vrot.lane.b32.xlu0 %v1193, 40
      %v1884 = vpop.permute.xlu0 %1883
      %1885 = vrot.lane.b32.xlu0 %v1194, 40
      %v1886 = vpop.permute.xlu0 %1885
      %1887 = vrot.lane.b32.xlu0 %v1195, 40
      %v1888 = vpop.permute.xlu0 %1887
      %1889 = vrot.lane.b32.xlu0 %v1196, 40
      %v1890 = vpop.permute.xlu0 %1889
      %1891 = vrot.lane.b32.xlu0 %v1197, 40
      %v1892 = vpop.permute.xlu0 %1891
      %1893 = vrot.lane.b32.xlu0 %v1198, 40
      %v1894 = vpop.permute.xlu0 %1893
      %1895 = vrot.lane.b32.xlu0 %v1199, 40
      %v1896 = vpop.permute.xlu0 %1895
      %1897 = vrot.lane.b32.xlu0 %v1200, 40
      %v1898 = vpop.permute.xlu0 %1897
      %1899 = vrot.lane.b32.xlu0 %v1201, 40
      %v1900 = vpop.permute.xlu0 %1899
      %1901 = vrot.lane.b32.xlu0 %v1202, 40
      %v1902 = vpop.permute.xlu0 %1901
      %1903 = vrot.lane.b32.xlu0 %v1203, 40
      %v1904 = vpop.permute.xlu0 %1903
      %1905 = vrot.lane.b32.xlu0 %v1204, 40
      %v1906 = vpop.permute.xlu0 %1905
      %1907 = vrot.lane.b32.xlu0 %v1205, 40
      %v1908 = vpop.permute.xlu0 %1907
      %1909 = vrot.lane.b32.xlu0 %v1206, 40
      %v1910 = vpop.permute.xlu0 %1909
      %1911 = vrot.lane.b32.xlu0 %v1207, 40
      %v1912 = vpop.permute.xlu0 %1911
      %1913 = vrot.lane.b32.xlu0 %v1208, 40
      %v1914 = vpop.permute.xlu0 %1913
      %1915 = vrot.lane.b32.xlu0 %v1209, 40
      %v1916 = vpop.permute.xlu0 %1915
      %1917 = vrot.lane.b32.xlu0 %v1210, 40
      %v1918 = vpop.permute.xlu0 %1917
      %1919 = vrot.lane.b32.xlu0 %v1211, 40
      %v1920 = vpop.permute.xlu0 %1919
      %1921 = vrot.lane.b32.xlu0 %v1212, 40
      %v1922 = vpop.permute.xlu0 %1921
      %1923 = vrot.lane.b32.xlu0 %v1213, 40
      %v1924 = vpop.permute.xlu0 %1923
      %1925 = vrot.lane.b32.xlu0 %v1214, 40
      %v1926 = vpop.permute.xlu0 %1925
      %1927 = vrot.lane.b32.xlu0 %v1215, 40
      %v1928 = vpop.permute.xlu0 %1927
      %1929 = vrot.lane.b32.xlu0 %v1216, 40
      %v1930 = vpop.permute.xlu0 %1929
      %1931 = vrot.lane.b32.xlu0 %v1217, 40
      %v1932 = vpop.permute.xlu0 %1931
      %1933 = vrot.lane.b32.xlu0 %v1218, 40
      %v1934 = vpop.permute.xlu0 %1933
      %1935 = vrot.lane.b32.xlu0 %v1219, 40
      %v1936 = vpop.permute.xlu0 %1935
      %1937 = vrot.lane.b32.xlu0 %v1220, 40
      %v1938 = vpop.permute.xlu0 %1937
      %1939 = vrot.lane.b32.xlu0 %v1221, 40
      %v1940 = vpop.permute.xlu0 %1939
      %1941 = vrot.lane.b32.xlu0 %v1222, 40
      %v1942 = vpop.permute.xlu0 %1941
      %1943 = vrot.lane.b32.xlu0 %v1223, 40
      %v1944 = vpop.permute.xlu0 %1943
      %1945 = vrot.lane.b32.xlu0 %v1224, 40
      %v1946 = vpop.permute.xlu0 %1945
      %1947 = vrot.lane.b32.xlu0 %v1225, 40
      %v1948 = vpop.permute.xlu0 %1947
      %1949 = vrot.lane.b32.xlu0 %v1226, 40
      %v1950 = vpop.permute.xlu0 %1949
      %1989 = vrot.lane.b32.xlu0 %v1193, 48
      %v1990 = vpop.permute.xlu0 %1989
      %1991 = vrot.lane.b32.xlu0 %v1194, 48
      %v1992 = vpop.permute.xlu0 %1991
      %1993 = vrot.lane.b32.xlu0 %v1195, 48
      %v1994 = vpop.permute.xlu0 %1993
      %1995 = vrot.lane.b32.xlu0 %v1196, 48
      %v1996 = vpop.permute.xlu0 %1995
      %1997 = vrot.lane.b32.xlu0 %v1197, 48
      %v1998 = vpop.permute.xlu0 %1997
      %1999 = vrot.lane.b32.xlu0 %v1198, 48
      %v2000 = vpop.permute.xlu0 %1999
      %2001 = vrot.lane.b32.xlu0 %v1199, 48
      %v2002 = vpop.permute.xlu0 %2001
      %2003 = vrot.lane.b32.xlu0 %v1200, 48
      %v2004 = vpop.permute.xlu0 %2003
      %2005 = vrot.lane.b32.xlu0 %v1201, 48
      %v2006 = vpop.permute.xlu0 %2005
      %2007 = vrot.lane.b32.xlu0 %v1202, 48
      %v2008 = vpop.permute.xlu0 %2007
      %2009 = vrot.lane.b32.xlu0 %v1203, 48
      %v2010 = vpop.permute.xlu0 %2009
      %2011 = vrot.lane.b32.xlu0 %v1204, 48
      %v2012 = vpop.permute.xlu0 %2011
      %2013 = vrot.lane.b32.xlu0 %v1205, 48
      %v2014 = vpop.permute.xlu0 %2013
      %2015 = vrot.lane.b32.xlu0 %v1206, 48
      %v2016 = vpop.permute.xlu0 %2015
      %2017 = vrot.lane.b32.xlu0 %v1207, 48
      %v2018 = vpop.permute.xlu0 %2017
      %2019 = vrot.lane.b32.xlu0 %v1208, 48
      %v2020 = vpop.permute.xlu0 %2019
      %2021 = vrot.lane.b32.xlu0 %v1209, 48
      %v2022 = vpop.permute.xlu0 %2021
      %2023 = vrot.lane.b32.xlu0 %v1210, 48
      %v2024 = vpop.permute.xlu0 %2023
      %2025 = vrot.lane.b32.xlu0 %v1211, 48
      %v2026 = vpop.permute.xlu0 %2025
      %2027 = vrot.lane.b32.xlu0 %v1212, 48
      %v2028 = vpop.permute.xlu0 %2027
      %2029 = vrot.lane.b32.xlu0 %v1213, 48
      %v2030 = vpop.permute.xlu0 %2029
      %2031 = vrot.lane.b32.xlu0 %v1214, 48
      %v2032 = vpop.permute.xlu0 %2031
      %2033 = vrot.lane.b32.xlu0 %v1215, 48
      %v2034 = vpop.permute.xlu0 %2033
      %2035 = vrot.lane.b32.xlu0 %v1216, 48
      %v2036 = vpop.permute.xlu0 %2035
      %2037 = vrot.lane.b32.xlu0 %v1217, 48
      %v2038 = vpop.permute.xlu0 %2037
      %2039 = vrot.lane.b32.xlu0 %v1218, 48
      %v2040 = vpop.permute.xlu0 %2039
      %2041 = vrot.lane.b32.xlu0 %v1219, 48
      %v2042 = vpop.permute.xlu0 %2041
      %2043 = vrot.lane.b32.xlu0 %v1220, 48
      %v2044 = vpop.permute.xlu0 %2043
      %2045 = vrot.lane.b32.xlu0 %v1221, 48
      %v2046 = vpop.permute.xlu0 %2045
      %2047 = vrot.lane.b32.xlu0 %v1222, 48
      %v2048 = vpop.permute.xlu0 %2047
      %2049 = vrot.lane.b32.xlu0 %v1223, 48
      %v2050 = vpop.permute.xlu0 %2049
      %2051 = vrot.lane.b32.xlu0 %v1224, 48
      %v2052 = vpop.permute.xlu0 %2051
      %2053 = vrot.lane.b32.xlu0 %v1225, 48
      %v2054 = vpop.permute.xlu0 %2053
      %2055 = vrot.lane.b32.xlu0 %v1226, 48
      %v2056 = vpop.permute.xlu0 %2055
      %2057 = vrot.lane.b32.xlu0 %v1227, 48
      %v2058 = vpop.permute.xlu0 %2057
      %2059 = vrot.lane.b32.xlu0 %v1228, 48
      %v2060 = vpop.permute.xlu0 %2059
      %2133 = vrot.lane.b32.xlu0 %v1229, 56
      %v2134 = vpop.permute.xlu0 %2133
      %2135 = vrot.lane.b32.xlu0 %v1230, 56
      %v2136 = vpop.permute.xlu0 %2135
      %2137 = vrot.lane.b32.xlu0 %v1231, 56
      %v2138 = vpop.permute.xlu0 %2137
      %2139 = vrot.lane.b32.xlu0 %v1232, 56
      %v2140 = vpop.permute.xlu0 %2139
      %2141 = vrot.lane.b32.xlu0 %v1233, 56
      %v2142 = vpop.permute.xlu0 %2141
      %2143 = vrot.lane.b32.xlu0 %v1234, 56
      %v2144 = vpop.permute.xlu0 %2143
      %2145 = vrot.lane.b32.xlu0 %v1235, 56
      %v2146 = vpop.permute.xlu0 %2145
      %2147 = vrot.lane.b32.xlu0 %v1236, 56
      %v2148 = vpop.permute.xlu0 %2147
      %2149 = vrot.lane.b32.xlu0 %v1237, 56
      %v2150 = vpop.permute.xlu0 %2149
      %2151 = vrot.lane.b32.xlu0 %v1238, 56
      %v2152 = vpop.permute.xlu0 %2151
      %2153 = vrot.lane.b32.xlu0 %v1239, 56
      %v2154 = vpop.permute.xlu0 %2153
      %2155 = vrot.lane.b32.xlu0 %v1240, 56
      %v2156 = vpop.permute.xlu0 %2155
      %2157 = vrot.lane.b32.xlu0 %v1241, 56
      %v2158 = vpop.permute.xlu0 %2157
      %2159 = vrot.lane.b32.xlu0 %v1242, 56
      %v2160 = vpop.permute.xlu0 %2159
      %2161 = vrot.lane.b32.xlu0 %v1243, 56
      %v2162 = vpop.permute.xlu0 %2161
      %2163 = vrot.lane.b32.xlu0 %v1244, 56
      %v2164 = vpop.permute.xlu0 %2163
      %2165 = vrot.lane.b32.xlu0 %v1245, 56
      %v2166 = vpop.permute.xlu0 %2165
      %2167 = vrot.lane.b32.xlu0 %v1246, 56
      %v2168 = vpop.permute.xlu0 %2167
      %2169 = vrot.lane.b32.xlu0 %v1247, 56
      %v2170 = vpop.permute.xlu0 %2169
      %2171 = vrot.lane.b32.xlu0 %v1248, 56
      %v2172 = vpop.permute.xlu0 %2171
      %2173 = vrot.lane.b32.xlu0 %v1249, 56
      %v2174 = vpop.permute.xlu0 %2173
      %2175 = vrot.lane.b32.xlu0 %v1250, 56
      %v2176 = vpop.permute.xlu0 %2175
      %2177 = vrot.lane.b32.xlu0 %v1251, 56
      %v2178 = vpop.permute.xlu0 %2177
      %2179 = vrot.lane.b32.xlu0 %v1252, 56
      %v2180 = vpop.permute.xlu0 %2179
      %2181 = vrot.lane.b32.xlu0 %v1253, 56
      %v2182 = vpop.permute.xlu0 %2181
      %2183 = vrot.lane.b32.xlu0 %v1254, 56
      %v2184 = vpop.permute.xlu0 %2183
      %2185 = vrot.lane.b32.xlu0 %v1255, 56
      %v2186 = vpop.permute.xlu0 %2185
      %2187 = vrot.lane.b32.xlu0 %v1256, 56
      %v2188 = vpop.permute.xlu0 %2187
      %2189 = vrot.lane.b32.xlu0 %v1257, 56
      %v2190 = vpop.permute.xlu0 %2189
      %2191 = vrot.lane.b32.xlu0 %v1258, 56
      %v2192 = vpop.permute.xlu0 %2191
      %2193 = vrot.lane.b32.xlu0 %v1259, 56
      %v2194 = vpop.permute.xlu0 %2193
      %2195 = vrot.lane.b32.xlu0 %v1260, 56
      %v2196 = vpop.permute.xlu0 %2195
      %2197 = vrot.lane.b32.xlu0 %v1261, 56
      %v2198 = vpop.permute.xlu0 %2197
      %2199 = vrot.lane.b32.xlu0 %v1262, 56
      %v2200 = vpop.permute.xlu0 %2199
      %2201 = vrot.lane.b32.xlu0 %v1263, 56
      %v2202 = vpop.permute.xlu0 %2201
      %2203 = vrot.lane.b32.xlu0 %v1264, 56
      %v2204 = vpop.permute.xlu0 %2203
      %2277 = vrot.lane.b32.xlu0 %v1265, 64
      %v2278 = vpop.permute.xlu0 %2277
      %2279 = vrot.lane.b32.xlu0 %v1266, 64
      %v2280 = vpop.permute.xlu0 %2279
      %2281 = vrot.lane.b32.xlu0 %v1267, 64
      %v2282 = vpop.permute.xlu0 %2281
      %2283 = vrot.lane.b32.xlu0 %v1268, 64
      %v2284 = vpop.permute.xlu0 %2283
      %2285 = vrot.lane.b32.xlu0 %v1269, 64
      %v2286 = vpop.permute.xlu0 %2285
      %2287 = vrot.lane.b32.xlu0 %v1270, 64
      %v2288 = vpop.permute.xlu0 %2287
      %2289 = vrot.lane.b32.xlu0 %v1271, 64
      %v2290 = vpop.permute.xlu0 %2289
      %2291 = vrot.lane.b32.xlu0 %v1272, 64
      %v2292 = vpop.permute.xlu0 %2291
      %2293 = vrot.lane.b32.xlu0 %v1273, 64
      %v2294 = vpop.permute.xlu0 %2293
      %2295 = vrot.lane.b32.xlu0 %v1274, 64
      %v2296 = vpop.permute.xlu0 %2295
      %2297 = vrot.lane.b32.xlu0 %v1275, 64
      %v2298 = vpop.permute.xlu0 %2297
      %2299 = vrot.lane.b32.xlu0 %v1276, 64
      %v2300 = vpop.permute.xlu0 %2299
      %2301 = vrot.lane.b32.xlu0 %v1277, 64
      %v2302 = vpop.permute.xlu0 %2301
      %2303 = vrot.lane.b32.xlu0 %v1278, 64
      %v2304 = vpop.permute.xlu0 %2303
      %2305 = vrot.lane.b32.xlu0 %v1279, 64
      %v2306 = vpop.permute.xlu0 %2305
      %2307 = vrot.lane.b32.xlu0 %v1280, 64
      %v2308 = vpop.permute.xlu0 %2307
      %2309 = vrot.lane.b32.xlu0 %v1281, 64
      %v2310 = vpop.permute.xlu0 %2309
      %2311 = vrot.lane.b32.xlu0 %v1282, 64
      %v2312 = vpop.permute.xlu0 %2311
      %2313 = vrot.lane.b32.xlu0 %v1283, 64
      %v2314 = vpop.permute.xlu0 %2313
      %2315 = vrot.lane.b32.xlu0 %v1284, 64
      %v2316 = vpop.permute.xlu0 %2315
      %2317 = vrot.lane.b32.xlu0 %v1285, 64
      %v2318 = vpop.permute.xlu0 %2317
      %2319 = vrot.lane.b32.xlu0 %v1286, 64
      %v2320 = vpop.permute.xlu0 %2319
      %2321 = vrot.lane.b32.xlu0 %v1287, 64
      %v2322 = vpop.permute.xlu0 %2321
      %2323 = vrot.lane.b32.xlu0 %v1288, 64
      %v2324 = vpop.permute.xlu0 %2323
      %2325 = vrot.lane.b32.xlu0 %v1289, 64
      %v2326 = vpop.permute.xlu0 %2325
      %2327 = vrot.lane.b32.xlu0 %v1290, 64
      %v2328 = vpop.permute.xlu0 %2327
      %2329 = vrot.lane.b32.xlu0 %v1291, 64
      %v2330 = vpop.permute.xlu0 %2329
      %2331 = vrot.lane.b32.xlu0 %v1292, 64
      %v2332 = vpop.permute.xlu0 %2331
      %2333 = vrot.lane.b32.xlu0 %v1293, 64
      %v2334 = vpop.permute.xlu0 %2333
      %2335 = vrot.lane.b32.xlu0 %v1294, 64
      %v2336 = vpop.permute.xlu0 %2335
      %2337 = vrot.lane.b32.xlu0 %v1295, 64
      %v2338 = vpop.permute.xlu0 %2337
      %2339 = vrot.lane.b32.xlu0 %v1296, 64
      %v2340 = vpop.permute.xlu0 %2339
      %2341 = vrot.lane.b32.xlu0 %v1297, 64
      %v2342 = vpop.permute.xlu0 %2341
      %2343 = vrot.lane.b32.xlu0 %v1298, 64
      %v2344 = vpop.permute.xlu0 %2343
      %2345 = vrot.lane.b32.xlu0 %v1299, 64
      %v2346 = vpop.permute.xlu0 %2345
      %2347 = vrot.lane.b32.xlu0 %v1300, 64
      %v2348 = vpop.permute.xlu0 %2347
      %v2385 = vsel %vm1002, %v1045, %v1338
      %v2386 = vsel %vm1002, %v1046, %v1340
      %v2387 = vsel %vm1002, %v1047, %v1342
      %v2388 = vsel %vm1002, %v1048, %v1344
      %v2389 = vsel %vm1002, %v1049, %v1346
      %v2390 = vsel %vm1002, %v1050, %v1348
      %v2391 = vsel %vm1002, %v1051, %v1350
      %v2392 = vsel %vm1002, %v1052, %v1352
      %v2393 = vsel %vm1002, %v1053, %v1354
      %v2394 = vsel %vm1002, %v1054, %v1356
      %v2395 = vsel %vm1002, %v1055, %v1358
      %v2396 = vsel %vm1002, %v1056, %v1360
      %v2397 = vsel %vm1002, %v1057, %v1362
      %v2398 = vsel %vm1002, %v1058, %v1364
      %v2399 = vsel %vm1002, %v1059, %v1366
      %v2400 = vsel %vm1002, %v1060, %v1368
      %v2401 = vsel %vm1002, %v1061, %v1370
      %v2402 = vsel %vm1002, %v1062, %v1372
      %v2403 = vsel %vm1002, %v1063, %v1374
      %v2404 = vsel %vm1002, %v1064, %v1376
      %v2405 = vsel %vm1002, %v1065, %v1378
      %v2406 = vsel %vm1002, %v1066, %v1380
      %v2407 = vsel %vm1002, %v1067, %v1382
      %v2408 = vsel %vm1002, %v1068, %v1384
      %v2409 = vsel %vm1002, %v1069, %v1386
      %v2410 = vsel %vm1002, %v1070, %v1388
      %v2411 = vsel %vm1002, %v1071, %v1390
      %v2412 = vsel %vm1002, %v1072, %v1392
      %v2413 = vsel %vm1002, %v1073, %v1394
      %v2414 = vsel %vm1002, %v1074, %v1396
      %v2415 = vsel %vm1002, %v1075, %v1398
      %v2416 = vsel %vm1002, %v1076, %v1400
      %v2417 = vsel %vm1002, %v1077, %v1402
      %v2418 = vsel %vm1002, %v1078, %v1404
      %v2419 = vsel %vm1002, %v1079, %v1406
      %v2420 = vsel %vm1002, %v1080, %v1408
      %vm2421 = vcmask 130048
      %v2422 = vsel %vm2421, %v2385, %v1482
      %v2423 = vsel %vm2421, %v2386, %v1484
      %v2424 = vsel %vm2421, %v2387, %v1486
      %v2425 = vsel %vm2421, %v2388, %v1488
      %v2426 = vsel %vm2421, %v2389, %v1490
      %v2427 = vsel %vm2421, %v2390, %v1492
      %v2428 = vsel %vm2421, %v2391, %v1494
      %v2429 = vsel %vm2421, %v2392, %v1496
      %v2430 = vsel %vm2421, %v2393, %v1498
      %v2431 = vsel %vm2421, %v2394, %v1500
      %v2432 = vsel %vm2421, %v2395, %v1502
      %v2433 = vsel %vm2421, %v2396, %v1504
      %v2434 = vsel %vm2421, %v2397, %v1506
      %v2435 = vsel %vm2421, %v2398, %v1508
      %v2436 = vsel %vm2421, %v2399, %v1510
      %v2437 = vsel %vm2421, %v2400, %v1512
      %v2438 = vsel %vm2421, %v2401, %v1514
      %v2439 = vsel %vm2421, %v2402, %v1516
      %v2440 = vsel %vm2421, %v2403, %v1518
      %v2441 = vsel %vm2421, %v2404, %v1520
      %v2442 = vsel %vm2421, %v2405, %v1522
      %v2443 = vsel %vm2421, %v2406, %v1524
      %v2444 = vsel %vm2421, %v2407, %v1526
      %v2445 = vsel %vm2421, %v2408, %v1528
      %v2446 = vsel %vm2421, %v2409, %v1530
      %v2447 = vsel %vm2421, %v2410, %v1532
      %v2448 = vsel %vm2421, %v2411, %v1534
      %v2449 = vsel %vm2421, %v2412, %v1536
      %v2450 = vsel %vm2421, %v2413, %v1538
      %v2451 = vsel %vm2421, %v2414, %v1540
      %v2452 = vsel %vm2421, %v2415, %v1542
      %v2453 = vsel %vm2421, %v2416, %v1544
      %v2454 = vsel %vm2421, %v2417, %v1546
      %v2455 = vsel %vm2421, %v2418, %v1548
      %v2456 = vsel %vm2421, %v2419, %v1550
      %v2457 = vsel %vm2421, %v2420, %v1552
      %vm2458 = vcmask 195584
      %v2459 = vsel %vm2458, %v2422, %v1592
      %v2460 = vsel %vm2458, %v2423, %v1594
      %v2461 = vsel %vm2458, %v2424, %v1596
      %v2462 = vsel %vm2458, %v2425, %v1598
      %v2463 = vsel %vm2458, %v2426, %v1600
      %v2464 = vsel %vm2458, %v2427, %v1602
      %v2465 = vsel %vm2458, %v2428, %v1604
      %v2466 = vsel %vm2458, %v2429, %v1606
      %v2467 = vsel %vm2458, %v2430, %v1608
      %v2468 = vsel %vm2458, %v2431, %v1610
      %v2469 = vsel %vm2458, %v2432, %v1612
      %v2470 = vsel %vm2458, %v2433, %v1614
      %v2471 = vsel %vm2458, %v2434, %v1616
      %v2472 = vsel %vm2458, %v2435, %v1618
      %v2473 = vsel %vm2458, %v2436, %v1620
      %v2474 = vsel %vm2458, %v2437, %v1622
      %v2475 = vsel %vm2458, %v2438, %v1624
      %v2476 = vsel %vm2458, %v2439, %v1626
      %v2477 = vsel %vm2458, %v2440, %v1628
      %v2478 = vsel %vm2458, %v2441, %v1630
      %v2479 = vsel %vm2458, %v2442, %v1632
      %v2480 = vsel %vm2458, %v2443, %v1634
      %v2481 = vsel %vm2458, %v2444, %v1636
      %v2482 = vsel %vm2458, %v2445, %v1638
      %v2483 = vsel %vm2458, %v2446, %v1640
      %v2484 = vsel %vm2458, %v2447, %v1642
      %v2485 = vsel %vm2458, %v2448, %v1644
      %v2486 = vsel %vm2458, %v2449, %v1646
      %v2487 = vsel %vm2458, %v2450, %v1648
      %v2488 = vsel %vm2458, %v2451, %v1650
      %v2489 = vsel %vm2458, %v2452, %v1652
      %v2490 = vsel %vm2458, %v2453, %v1654
      %v2491 = vsel %vm2458, %v2454, %v1656
      %v2492 = vsel %vm2458, %v2455, %v1658
      %v2493 = vsel %vm2458, %v2456, %v1660
      %v2494 = vsel %vm2458, %v2457, %v1662
      %vm2495 = vcmask 261120
      %v2496 = vsel %vm2495, %v2459, %v1736
      %v2497 = vsel %vm2495, %v2460, %v1738
      %v2498 = vsel %vm2495, %v2461, %v1740
      %v2499 = vsel %vm2495, %v2462, %v1742
      %v2500 = vsel %vm2495, %v2463, %v1744
      %v2501 = vsel %vm2495, %v2464, %v1746
      %v2502 = vsel %vm2495, %v2465, %v1748
      %v2503 = vsel %vm2495, %v2466, %v1750
      %v2504 = vsel %vm2495, %v2467, %v1752
      %v2505 = vsel %vm2495, %v2468, %v1754
      %v2506 = vsel %vm2495, %v2469, %v1756
      %v2507 = vsel %vm2495, %v2470, %v1758
      %v2508 = vsel %vm2495, %v2471, %v1760
      %v2509 = vsel %vm2495, %v2472, %v1762
      %v2510 = vsel %vm2495, %v2473, %v1764
      %v2511 = vsel %vm2495, %v2474, %v1766
      %v2512 = vsel %vm2495, %v2475, %v1768
      %v2513 = vsel %vm2495, %v2476, %v1770
      %v2514 = vsel %vm2495, %v2477, %v1772
      %v2515 = vsel %vm2495, %v2478, %v1774
      %v2516 = vsel %vm2495, %v2479, %v1776
      %v2517 = vsel %vm2495, %v2480, %v1778
      %v2518 = vsel %vm2495, %v2481, %v1780
      %v2519 = vsel %vm2495, %v2482, %v1782
      %v2520 = vsel %vm2495, %v2483, %v1784
      %v2521 = vsel %vm2495, %v2484, %v1786
      %v2522 = vsel %vm2495, %v2485, %v1788
      %v2523 = vsel %vm2495, %v2486, %v1790
      %v2524 = vsel %vm2495, %v2487, %v1792
      %v2525 = vsel %vm2495, %v2488, %v1794
      %v2526 = vsel %vm2495, %v2489, %v1796
      %v2527 = vsel %vm2495, %v2490, %v1798
      %v2528 = vsel %vm2495, %v2491, %v1800
      %v2529 = vsel %vm2495, %v2492, %v1802
      %v2530 = vsel %vm2495, %v2493, %v1804
      %v2531 = vsel %vm2495, %v2494, %v1806
      %vm2532 = vcmask 326656
      %v2533 = vsel %vm2532, %v2496, %v1880
      %v2534 = vsel %vm2532, %v2497, %v1882
      %v2535 = vsel %vm2532, %v2498, %v1884
      %v2536 = vsel %vm2532, %v2499, %v1886
      %v2537 = vsel %vm2532, %v2500, %v1888
      %v2538 = vsel %vm2532, %v2501, %v1890
      %v2539 = vsel %vm2532, %v2502, %v1892
      %v2540 = vsel %vm2532, %v2503, %v1894
      %v2541 = vsel %vm2532, %v2504, %v1896
      %v2542 = vsel %vm2532, %v2505, %v1898
      %v2543 = vsel %vm2532, %v2506, %v1900
      %v2544 = vsel %vm2532, %v2507, %v1902
      %v2545 = vsel %vm2532, %v2508, %v1904
      %v2546 = vsel %vm2532, %v2509, %v1906
      %v2547 = vsel %vm2532, %v2510, %v1908
      %v2548 = vsel %vm2532, %v2511, %v1910
      %v2549 = vsel %vm2532, %v2512, %v1912
      %v2550 = vsel %vm2532, %v2513, %v1914
      %v2551 = vsel %vm2532, %v2514, %v1916
      %v2552 = vsel %vm2532, %v2515, %v1918
      %v2553 = vsel %vm2532, %v2516, %v1920
      %v2554 = vsel %vm2532, %v2517, %v1922
      %v2555 = vsel %vm2532, %v2518, %v1924
      %v2556 = vsel %vm2532, %v2519, %v1926
      %v2557 = vsel %vm2532, %v2520, %v1928
      %v2558 = vsel %vm2532, %v2521, %v1930
      %v2559 = vsel %vm2532, %v2522, %v1932
      %v2560 = vsel %vm2532, %v2523, %v1934
      %v2561 = vsel %vm2532, %v2524, %v1936
      %v2562 = vsel %vm2532, %v2525, %v1938
      %v2563 = vsel %vm2532, %v2526, %v1940
      %v2564 = vsel %vm2532, %v2527, %v1942
      %v2565 = vsel %vm2532, %v2528, %v1944
      %v2566 = vsel %vm2532, %v2529, %v1946
      %v2567 = vsel %vm2532, %v2530, %v1948
      %v2568 = vsel %vm2532, %v2531, %v1950
      %vm2569 = vcmask 392192
      %v2570 = vsel %vm2569, %v2533, %v1990
      %v2571 = vsel %vm2569, %v2534, %v1992
      %v2572 = vsel %vm2569, %v2535, %v1994
      %v2573 = vsel %vm2569, %v2536, %v1996
      %v2574 = vsel %vm2569, %v2537, %v1998
      %v2575 = vsel %vm2569, %v2538, %v2000
      %v2576 = vsel %vm2569, %v2539, %v2002
      %v2577 = vsel %vm2569, %v2540, %v2004
      %v2578 = vsel %vm2569, %v2541, %v2006
      %v2579 = vsel %vm2569, %v2542, %v2008
      %v2580 = vsel %vm2569, %v2543, %v2010
      %v2581 = vsel %vm2569, %v2544, %v2012
      %v2582 = vsel %vm2569, %v2545, %v2014
      %v2583 = vsel %vm2569, %v2546, %v2016
      %v2584 = vsel %vm2569, %v2547, %v2018
      %v2585 = vsel %vm2569, %v2548, %v2020
      %v2586 = vsel %vm2569, %v2549, %v2022
      %v2587 = vsel %vm2569, %v2550, %v2024
      %v2588 = vsel %vm2569, %v2551, %v2026
      %v2589 = vsel %vm2569, %v2552, %v2028
      %v2590 = vsel %vm2569, %v2553, %v2030
      %v2591 = vsel %vm2569, %v2554, %v2032
      %v2592 = vsel %vm2569, %v2555, %v2034
      %v2593 = vsel %vm2569, %v2556, %v2036
      %v2594 = vsel %vm2569, %v2557, %v2038
      %v2595 = vsel %vm2569, %v2558, %v2040
      %v2596 = vsel %vm2569, %v2559, %v2042
      %v2597 = vsel %vm2569, %v2560, %v2044
      %v2598 = vsel %vm2569, %v2561, %v2046
      %v2599 = vsel %vm2569, %v2562, %v2048
      %v2600 = vsel %vm2569, %v2563, %v2050
      %v2601 = vsel %vm2569, %v2564, %v2052
      %v2602 = vsel %vm2569, %v2565, %v2054
      %v2603 = vsel %vm2569, %v2566, %v2056
      %v2604 = vsel %vm2569, %v2567, %v2058
      %v2605 = vsel %vm2569, %v2568, %v2060
      %vm2606 = vcmask 457728
      %v2607 = vsel %vm2606, %v2570, %v2134
      %v2608 = vsel %vm2606, %v2571, %v2136
      %v2609 = vsel %vm2606, %v2572, %v2138
      %v2610 = vsel %vm2606, %v2573, %v2140
      %v2611 = vsel %vm2606, %v2574, %v2142
      %v2612 = vsel %vm2606, %v2575, %v2144
      %v2613 = vsel %vm2606, %v2576, %v2146
      %v2614 = vsel %vm2606, %v2577, %v2148
      %v2615 = vsel %vm2606, %v2578, %v2150
      %v2616 = vsel %vm2606, %v2579, %v2152
      %v2617 = vsel %vm2606, %v2580, %v2154
      %v2618 = vsel %vm2606, %v2581, %v2156
      %v2619 = vsel %vm2606, %v2582, %v2158
      %v2620 = vsel %vm2606, %v2583, %v2160
      %v2621 = vsel %vm2606, %v2584, %v2162
      %v2622 = vsel %vm2606, %v2585, %v2164
      %v2623 = vsel %vm2606, %v2586, %v2166
      %v2624 = vsel %vm2606, %v2587, %v2168
      %v2625 = vsel %vm2606, %v2588, %v2170
      %v2626 = vsel %vm2606, %v2589, %v2172
      %v2627 = vsel %vm2606, %v2590, %v2174
      %v2628 = vsel %vm2606, %v2591, %v2176
      %v2629 = vsel %vm2606, %v2592, %v2178
      %v2630 = vsel %vm2606, %v2593, %v2180
      %v2631 = vsel %vm2606, %v2594, %v2182
      %v2632 = vsel %vm2606, %v2595, %v2184
      %v2633 = vsel %vm2606, %v2596, %v2186
      %v2634 = vsel %vm2606, %v2597, %v2188
      %v2635 = vsel %vm2606, %v2598, %v2190
      %v2636 = vsel %vm2606, %v2599, %v2192
      %v2637 = vsel %vm2606, %v2600, %v2194
      %v2638 = vsel %vm2606, %v2601, %v2196
      %v2639 = vsel %vm2606, %v2602, %v2198
      %v2640 = vsel %vm2606, %v2603, %v2200
      %v2641 = vsel %vm2606, %v2604, %v2202
      %v2642 = vsel %vm2606, %v2605, %v2204
      %vm2643 = vcmask 523264
      %v2644 = vsel %vm2643, %v2607, %v2278
      %v2645 = vsel %vm2643, %v2608, %v2280
      %v2646 = vsel %vm2643, %v2609, %v2282
      %v2647 = vsel %vm2643, %v2610, %v2284
      %v2648 = vsel %vm2643, %v2611, %v2286
      %v2649 = vsel %vm2643, %v2612, %v2288
      %v2650 = vsel %vm2643, %v2613, %v2290
      %v2651 = vsel %vm2643, %v2614, %v2292
      %v2652 = vsel %vm2643, %v2615, %v2294
      %v2653 = vsel %vm2643, %v2616, %v2296
      %v2654 = vsel %vm2643, %v2617, %v2298
      %v2655 = vsel %vm2643, %v2618, %v2300
      %v2656 = vsel %vm2643, %v2619, %v2302
      %v2657 = vsel %vm2643, %v2620, %v2304
      %v2658 = vsel %vm2643, %v2621, %v2306
      %v2659 = vsel %vm2643, %v2622, %v2308
      %v2660 = vsel %vm2643, %v2623, %v2310
      %v2661 = vsel %vm2643, %v2624, %v2312
      %v2662 = vsel %vm2643, %v2625, %v2314
      %v2663 = vsel %vm2643, %v2626, %v2316
      %v2664 = vsel %vm2643, %v2627, %v2318
      %v2665 = vsel %vm2643, %v2628, %v2320
      %v2666 = vsel %vm2643, %v2629, %v2322
      %v2667 = vsel %vm2643, %v2630, %v2324
      %v2668 = vsel %vm2643, %v2631, %v2326
      %v2669 = vsel %vm2643, %v2632, %v2328
      %v2670 = vsel %vm2643, %v2633, %v2330
      %v2671 = vsel %vm2643, %v2634, %v2332
      %v2672 = vsel %vm2643, %v2635, %v2334
      %v2673 = vsel %vm2643, %v2636, %v2336
      %v2674 = vsel %vm2643, %v2637, %v2338
      %v2675 = vsel %vm2643, %v2638, %v2340
      %v2676 = vsel %vm2643, %v2639, %v2342
      %v2677 = vsel %vm2643, %v2640, %v2344
      %v2678 = vsel %vm2643, %v2641, %v2346
      %v2679 = vsel %vm2643, %v2642, %v2348
      %v2680 = vpack.c.bf16 %v2645, %v2644
      %v2681 = vpack.c.bf16 %v2647, %v2646
      %v2682 = vpack.c.bf16 %v2649, %v2648
      %v2683 = vpack.c.bf16 %v2651, %v2650
      %v2684 = vpack.c.bf16 %v2653, %v2652
      %v2685 = vpack.c.bf16 %v2655, %v2654
      %v2686 = vpack.c.bf16 %v2657, %v2656
      %v2687 = vpack.c.bf16 %v2659, %v2658
      %v2688 = vpack.c.bf16 %v2661, %v2660
      %v2689 = vpack.c.bf16 %v2663, %v2662
      %v2690 = vpack.c.bf16 %v2665, %v2664
      %v2691 = vpack.c.bf16 %v2667, %v2666
      %v2692 = vpack.c.bf16 %v2669, %v2668
      %v2693 = vpack.c.bf16 %v2671, %v2670
      %v2694 = vpack.c.bf16 %v2673, %v2672
      %v2695 = vpack.c.bf16 %v2675, %v2674
      %v2696 = vpack.c.bf16 %v2677, %v2676
      %v2697 = vpack.c.bf16 %v2679, %v2678
      %v2698 = vld [vmem:[%s4] sm:$0xf]
      %v2699 = vld [vmem:[%s4 + $0x4] sm:$0xf]
      %v2700 = vld [vmem:[%s4 + $0x8] sm:$0xf]
      %v2701 = vld [vmem:[%s4 + $0xc] sm:$0xf]
      %v2702 = vld [vmem:[%s4 + $0x10] sm:$0xf]
      %v2703 = vld [vmem:[%s4 + $0x14] sm:$0xf]
      %v2704 = vld [vmem:[%s4 + $0x18] sm:$0xf]
      %v2705 = vld [vmem:[%s4 + $0x1c] sm:$0xf]
      %v2706 = vld [vmem:[%s4 + $0x20] sm:$0xf]
      %v2707 = vld [vmem:[%s5] sm:$0x1]
      %v2709 = vlaneseq
      %v2710 = vshrl.u32 %v2709, 7
      %v2711 = vsub.s32 0, %v2710
      %v2712 = vrot.slane %v2707, %v2711
      %v2723 = vunpack.c.l.b16 %v2698
      %v2724 = vunpack.c.l.b16 %v2699
      %v2725 = vunpack.c.l.b16 %v2700
      %v2726 = vunpack.c.l.b16 %v2701
      %v2727 = vunpack.c.l.b16 %v2702
      %v2728 = vunpack.c.l.b16 %v2703
      %v2729 = vunpack.c.l.b16 %v2704
      %v2730 = vunpack.c.l.b16 %v2705
      %v2731 = vunpack.c.l.b16 %v2706
      %v2732 = vpack.c.b16 %v2724, %v2723
      %v2733 = vpack.c.b16 %v2726, %v2725
      %v2734 = vpack.c.b16 %v2728, %v2727
      %v2735 = vpack.c.b16 %v2730, %v2729
      %v2736 = vpack.c.b16 %v2731, %v2731
      %vm2741 = vcmask 588800
      %v2743 = vsel %vm2741, %v2680, 0
      %v2746 = vsel %vm2741, %v2681, 0
      %v2749 = vsel %vm2741, %v2682, 0
      %v2752 = vsel %vm2741, %v2683, 0
      %v2755 = vsel %vm2741, %v2684, 0
      %v2758 = vsel %vm2741, %v2685, 0
      %v2761 = vsel %vm2741, %v2686, 0
      %v2764 = vsel %vm2741, %v2687, 0
      %v2767 = vsel %vm2741, %v2688, 0
      %v2770 = vsel %vm2741, %v2689, 0
      %v2773 = vsel %vm2741, %v2690, 0
      %v2776 = vsel %vm2741, %v2691, 0
      %v2779 = vsel %vm2741, %v2692, 0
      %v2782 = vsel %vm2741, %v2693, 0
      %v2785 = vsel %vm2741, %v2694, 0
      %v2788 = vsel %vm2741, %v2695, 0
      %v2791 = vsel %vm2741, %v2696, 0
      %v2794 = vsel %vm2741, %v2697, 0
      %vm2796 = vcmask 1043456
      %v2798 = vsel %vm2796, %v2736, 0
      %2800 = vmatprep.subr.bf16.mxu0 0
      %2801 = vmatpush1.bf16.msra.mxu0 %v2732
      %2802 = vmatprep.subr.bf16.mxu0 0
      %2803 = vmatpush1.bf16.msra.mxu0 %v2733
      %2804 = vmatprep.subr.bf16.mxu0 0
      %2805 = vmatpush1.bf16.msra.mxu0 %v2734
      %2806 = vmatprep.subr.bf16.mxu0 0
      %2807 = vmatpush1.bf16.msra.mxu0 %v2735
      %2808 = vmatprep.subr.bf16.mxu0 0
      %2809 = vmatpush1.bf16.msra.mxu0 %v2798
      %2810 = vmatprep.subr.bf16.mxu0 0
      %2811 = vmatpush1.bf16.msra.mxu0 0
      %2812 = vmatprep.subr.bf16.mxu0 0
      %2813 = vmatpush1.bf16.msra.mxu0 0
      %2814 = vmatprep.subr.bf16.mxu0 0
      %2815 = vmatpush1.bf16.msra.mxu0 0
      %2816 = vmatprep.subr.bf16.mxu0 0
      %2817 = vmatpush1.bf16.msra.mxu0 0
      %2818 = vmatprep.subr.bf16.mxu0 0
      %2819 = vmatpush1.bf16.msra.mxu0 0
      %2820 = vmatprep.subr.bf16.mxu0 0
      %2821 = vmatpush1.bf16.msra.mxu0 0
      %2822 = vmatprep.subr.bf16.mxu0 0
      %2823 = vmatpush1.bf16.msra.mxu0 0
      %2824 = vmatprep.subr.bf16.mxu0 0
      %2825 = vmatpush1.bf16.msra.mxu0 0
      %2826 = vmatprep.subr.bf16.mxu0 0
      %2827 = vmatpush1.bf16.msra.mxu0 0
      %2828 = vmatprep.subr.bf16.mxu0 0
      %2829 = vmatpush1.bf16.msra.mxu0 0
      %2830 = vmatprep.subr.bf16.mxu0 0
      %2831 = vmatpush1.bf16.msra.mxu0 0
      %2832 = vmatprep.mubr.bf16.mxu0 0
      %2833 = vmatmul.mubr.bf16.gmra.mrb[0].mxu0 %v2743
      %v2834 = vpop.f32.mrb[0].mxu0
      %v2835 = vadd.f32 %v2712, %v2834
      %v2836 = vpop.f32.mrb[0].mxu0
      %v2837 = vpop.f32.mrb[0].mxu0
      %v2838 = vadd.f32 %v2712, %v2837
      %v2839 = vpop.f32.mrb[0].mxu0
      %2840 = vmatprep.mubr.bf16.mxu0 0
      %2841 = vmatmul.mubr.bf16.gmra.mrb[0].mxu0 %v2746
      %v2842 = vpop.f32.mrb[0].mxu0
      %v2843 = vadd.f32 %v2712, %v2842
      %v2844 = vpop.f32.mrb[0].mxu0
      %v2845 = vpop.f32.mrb[0].mxu0
      %v2846 = vadd.f32 %v2712, %v2845
      %v2847 = vpop.f32.mrb[0].mxu0
      %2848 = vmatprep.mubr.bf16.mxu0 0
      %2849 = vmatmul.mubr.bf16.gmra.mrb[0].mxu0 %v2749
      %v2850 = vpop.f32.mrb[0].mxu0
      %v2851 = vadd.f32 %v2712, %v2850
      %v2852 = vpop.f32.mrb[0].mxu0
      %v2853 = vpop.f32.mrb[0].mxu0
      %v2854 = vadd.f32 %v2712, %v2853
      %v2855 = vpop.f32.mrb[0].mxu0
      %2856 = vmatprep.mubr.bf16.mxu0 0
      %2857 = vmatmul.mubr.bf16.gmra.mrb[0].mxu0 %v2752
      %v2858 = vpop.f32.mrb[0].mxu0
      %v2859 = vadd.f32 %v2712, %v2858
      %v2860 = vpop.f32.mrb[0].mxu0
      %v2861 = vpop.f32.mrb[0].mxu0
      %v2862 = vadd.f32 %v2712, %v2861
      %v2863 = vpop.f32.mrb[0].mxu0
      %2864 = vmatprep.mubr.bf16.mxu0 0
      %2865 = vmatmul.mubr.bf16.gmra.mrb[0].mxu0 %v2755
      %v2866 = vpop.f32.mrb[0].mxu0
      %v2867 = vadd.f32 %v2712, %v2866
      %v2868 = vpop.f32.mrb[0].mxu0
      %v2869 = vpop.f32.mrb[0].mxu0
      %v2870 = vadd.f32 %v2712, %v2869
      %v2871 = vpop.f32.mrb[0].mxu0
      %2872 = vmatprep.mubr.bf16.mxu0 0
      %2873 = vmatmul.mubr.bf16.gmra.mrb[0].mxu0 %v2758
      %v2874 = vpop.f32.mrb[0].mxu0
      %v2875 = vadd.f32 %v2712, %v2874
      %v2876 = vpop.f32.mrb[0].mxu0
      %v2877 = vpop.f32.mrb[0].mxu0
      %v2878 = vadd.f32 %v2712, %v2877
      %v2879 = vpop.f32.mrb[0].mxu0
      %2880 = vmatprep.mubr.bf16.mxu0 0
      %2881 = vmatmul.mubr.bf16.gmra.mrb[0].mxu0 %v2761
      %v2882 = vpop.f32.mrb[0].mxu0
      %v2883 = vadd.f32 %v2712, %v2882
      %v2884 = vpop.f32.mrb[0].mxu0
      %v2885 = vpop.f32.mrb[0].mxu0
      %v2886 = vadd.f32 %v2712, %v2885
      %v2887 = vpop.f32.mrb[0].mxu0
      %2888 = vmatprep.mubr.bf16.mxu0 0
      %2889 = vmatmul.mubr.bf16.gmra.mrb[0].mxu0 %v2764
      %v2890 = vpop.f32.mrb[0].mxu0
      %v2891 = vadd.f32 %v2712, %v2890
      %v2892 = vpop.f32.mrb[0].mxu0
      %v2893 = vpop.f32.mrb[0].mxu0
      %v2894 = vadd.f32 %v2712, %v2893
      %v2895 = vpop.f32.mrb[0].mxu0
      %2896 = vmatprep.mubr.bf16.mxu0 0
      %2897 = vmatmul.mubr.bf16.gmra.mrb[0].mxu0 %v2767
      %v2898 = vpop.f32.mrb[0].mxu0
      %v2899 = vadd.f32 %v2712, %v2898
      %v2900 = vpop.f32.mrb[0].mxu0
      %v2901 = vpop.f32.mrb[0].mxu0
      %v2902 = vadd.f32 %v2712, %v2901
      %v2903 = vpop.f32.mrb[0].mxu0
      %2904 = vmatprep.mubr.bf16.mxu0 0
      %2905 = vmatmul.mubr.bf16.gmra.mrb[0].mxu0 %v2770
      %v2906 = vpop.f32.mrb[0].mxu0
      %v2907 = vadd.f32 %v2712, %v2906
      %v2908 = vpop.f32.mrb[0].mxu0
      %v2909 = vpop.f32.mrb[0].mxu0
      %v2910 = vadd.f32 %v2712, %v2909
      %v2911 = vpop.f32.mrb[0].mxu0
      %2912 = vmatprep.mubr.bf16.mxu0 0
      %2913 = vmatmul.mubr.bf16.gmra.mrb[0].mxu0 %v2773
      %v2914 = vpop.f32.mrb[0].mxu0
      %v2915 = vadd.f32 %v2712, %v2914
      %v2916 = vpop.f32.mrb[0].mxu0
      %v2917 = vpop.f32.mrb[0].mxu0
      %v2918 = vadd.f32 %v2712, %v2917
      %v2919 = vpop.f32.mrb[0].mxu0
      %2920 = vmatprep.mubr.bf16.mxu0 0
      %2921 = vmatmul.mubr.bf16.gmra.mrb[0].mxu0 %v2776
      %v2922 = vpop.f32.mrb[0].mxu0
      %v2923 = vadd.f32 %v2712, %v2922
      %v2924 = vpop.f32.mrb[0].mxu0
      %v2925 = vpop.f32.mrb[0].mxu0
      %v2926 = vadd.f32 %v2712, %v2925
      %v2927 = vpop.f32.mrb[0].mxu0
      %2928 = vmatprep.mubr.bf16.mxu0 0
      %2929 = vmatmul.mubr.bf16.gmra.mrb[0].mxu0 %v2779
      %v2930 = vpop.f32.mrb[0].mxu0
      %v2931 = vadd.f32 %v2712, %v2930
      %v2932 = vpop.f32.mrb[0].mxu0
      %v2933 = vpop.f32.mrb[0].mxu0
      %v2934 = vadd.f32 %v2712, %v2933
      %v2935 = vpop.f32.mrb[0].mxu0
      %2936 = vmatprep.mubr.bf16.mxu0 0
      %2937 = vmatmul.mubr.bf16.gmra.mrb[0].mxu0 %v2782
      %v2938 = vpop.f32.mrb[0].mxu0
      %v2939 = vadd.f32 %v2712, %v2938
      %v2940 = vpop.f32.mrb[0].mxu0
      %v2941 = vpop.f32.mrb[0].mxu0
      %v2942 = vadd.f32 %v2712, %v2941
      %v2943 = vpop.f32.mrb[0].mxu0
      %2944 = vmatprep.mubr.bf16.mxu0 0
      %2945 = vmatmul.mubr.bf16.gmra.mrb[0].mxu0 %v2785
      %v2946 = vpop.f32.mrb[0].mxu0
      %v2947 = vadd.f32 %v2712, %v2946
      %v2948 = vpop.f32.mrb[0].mxu0
      %v2949 = vpop.f32.mrb[0].mxu0
      %v2950 = vadd.f32 %v2712, %v2949
      %v2951 = vpop.f32.mrb[0].mxu0
      %2952 = vmatprep.mubr.bf16.mxu0 0
      %2953 = vmatmul.mubr.bf16.gmra.mrb[0].mxu0 %v2788
      %v2954 = vpop.f32.mrb[0].mxu0
      %v2955 = vadd.f32 %v2712, %v2954
      %v2956 = vpop.f32.mrb[0].mxu0
      %v2957 = vpop.f32.mrb[0].mxu0
      %v2958 = vadd.f32 %v2712, %v2957
      %v2959 = vpop.f32.mrb[0].mxu0
      %2960 = vmatprep.mubr.bf16.mxu0 0
      %2961 = vmatmul.mubr.bf16.gmra.mrb[0].mxu0 %v2791
      %v2962 = vpop.f32.mrb[0].mxu0
      %v2963 = vadd.f32 %v2712, %v2962
      %v2964 = vpop.f32.mrb[0].mxu0
      %v2965 = vpop.f32.mrb[0].mxu0
      %v2966 = vadd.f32 %v2712, %v2965
      %v2967 = vpop.f32.mrb[0].mxu0
      %2968 = vmatprep.mubr.bf16.mxu0 0
      %2969 = vmatmul.mubr.bf16.gmra.mrb[0].mxu0 %v2794
      %v2970 = vpop.f32.mrb[0].mxu0
      %v2971 = vadd.f32 %v2712, %v2970
      %v2972 = vpop.f32.mrb[0].mxu0
      %v2973 = vpop.f32.mrb[0].mxu0
      %v2974 = vadd.f32 %v2712, %v2973
      %v2975 = vpop.f32.mrb[0].mxu0
      %2976 = vdwg.mxu0
      %vm2977 = vcmp.gt.f32.partialorder %v2835, 0.0
      %vm2978 = vcmp.gt.f32.partialorder %v2838, 0.0
      %vm2979 = vcmp.gt.f32.partialorder %v2843, 0.0
      %vm2980 = vcmp.gt.f32.partialorder %v2846, 0.0
      %vm2981 = vcmp.gt.f32.partialorder %v2851, 0.0
      %vm2982 = vcmp.gt.f32.partialorder %v2854, 0.0
      %vm2983 = vcmp.gt.f32.partialorder %v2859, 0.0
      %vm2984 = vcmp.gt.f32.partialorder %v2862, 0.0
      %vm2985 = vcmp.gt.f32.partialorder %v2867, 0.0
      %vm2986 = vcmp.gt.f32.partialorder %v2870, 0.0
      %vm2987 = vcmp.gt.f32.partialorder %v2875, 0.0
      %vm2988 = vcmp.gt.f32.partialorder %v2878, 0.0
      %vm2989 = vcmp.gt.f32.partialorder %v2883, 0.0
      %vm2990 = vcmp.gt.f32.partialorder %v2886, 0.0
      %vm2991 = vcmp.gt.f32.partialorder %v2891, 0.0
      %vm2992 = vcmp.gt.f32.partialorder %v2894, 0.0
      %vm2993 = vcmp.gt.f32.partialorder %v2899, 0.0
      %vm2994 = vcmp.gt.f32.partialorder %v2902, 0.0
      %vm2995 = vcmp.gt.f32.partialorder %v2907, 0.0
      %vm2996 = vcmp.gt.f32.partialorder %v2910, 0.0
      %vm2997 = vcmp.gt.f32.partialorder %v2915, 0.0
      %vm2998 = vcmp.gt.f32.partialorder %v2918, 0.0
      %vm2999 = vcmp.gt.f32.partialorder %v2923, 0.0
      %vm3000 = vcmp.gt.f32.partialorder %v2926, 0.0
      %vm3001 = vcmp.gt.f32.partialorder %v2931, 0.0
      %vm3002 = vcmp.gt.f32.partialorder %v2934, 0.0
      %vm3003 = vcmp.gt.f32.partialorder %v2939, 0.0
      %vm3004 = vcmp.gt.f32.partialorder %v2942, 0.0
      %vm3005 = vcmp.gt.f32.partialorder %v2947, 0.0
      %vm3006 = vcmp.gt.f32.partialorder %v2950, 0.0
      %vm3007 = vcmp.gt.f32.partialorder %v2955, 0.0
      %vm3008 = vcmp.gt.f32.partialorder %v2958, 0.0
      %vm3009 = vcmp.gt.f32.partialorder %v2963, 0.0
      %vm3010 = vcmp.gt.f32.partialorder %v2966, 0.0
      %vm3011 = vcmp.gt.f32.partialorder %v2971, 0.0
      %vm3012 = vcmp.gt.f32.partialorder %v2974, 0.0
      %v3013 = vmul.f32 %v2835, 0.2
      %v3014 = vmul.f32 %v2838, 0.2
      %v3015 = vmul.f32 %v2843, 0.2
      %v3016 = vmul.f32 %v2846, 0.2
      %v3017 = vmul.f32 %v2851, 0.2
      %v3018 = vmul.f32 %v2854, 0.2
      %v3019 = vmul.f32 %v2859, 0.2
      %v3020 = vmul.f32 %v2862, 0.2
      %v3021 = vmul.f32 %v2867, 0.2
      %v3022 = vmul.f32 %v2870, 0.2
      %v3023 = vmul.f32 %v2875, 0.2
      %v3024 = vmul.f32 %v2878, 0.2
      %v3025 = vmul.f32 %v2883, 0.2
      %v3026 = vmul.f32 %v2886, 0.2
      %v3027 = vmul.f32 %v2891, 0.2
      %v3028 = vmul.f32 %v2894, 0.2
      %v3029 = vmul.f32 %v2899, 0.2
      %v3030 = vmul.f32 %v2902, 0.2
      %v3031 = vmul.f32 %v2907, 0.2
      %v3032 = vmul.f32 %v2910, 0.2
      %v3033 = vmul.f32 %v2915, 0.2
      %v3034 = vmul.f32 %v2918, 0.2
      %v3035 = vmul.f32 %v2923, 0.2
      %v3036 = vmul.f32 %v2926, 0.2
      %v3037 = vmul.f32 %v2931, 0.2
      %v3038 = vmul.f32 %v2934, 0.2
      %v3039 = vmul.f32 %v2939, 0.2
      %v3040 = vmul.f32 %v2942, 0.2
      %v3041 = vmul.f32 %v2947, 0.2
      %v3042 = vmul.f32 %v2950, 0.2
      %v3043 = vmul.f32 %v2955, 0.2
      %v3044 = vmul.f32 %v2958, 0.2
      %v3045 = vmul.f32 %v2963, 0.2
      %v3046 = vmul.f32 %v2966, 0.2
      %v3047 = vmul.f32 %v2971, 0.2
      %v3048 = vmul.f32 %v2974, 0.2
      %v3049 = vsel %vm2977, %v2835, %v3013
      %v3050 = vsel %vm2978, %v2838, %v3014
      %v3051 = vsel %vm2979, %v2843, %v3015
      %v3052 = vsel %vm2980, %v2846, %v3016
      %v3053 = vsel %vm2981, %v2851, %v3017
      %v3054 = vsel %vm2982, %v2854, %v3018
      %v3055 = vsel %vm2983, %v2859, %v3019
      %v3056 = vsel %vm2984, %v2862, %v3020
      %v3057 = vsel %vm2985, %v2867, %v3021
      %v3058 = vsel %vm2986, %v2870, %v3022
      %v3059 = vsel %vm2987, %v2875, %v3023
      %v3060 = vsel %vm2988, %v2878, %v3024
      %v3061 = vsel %vm2989, %v2883, %v3025
      %v3062 = vsel %vm2990, %v2886, %v3026
      %v3063 = vsel %vm2991, %v2891, %v3027
      %v3064 = vsel %vm2992, %v2894, %v3028
      %v3065 = vsel %vm2993, %v2899, %v3029
      %v3066 = vsel %vm2994, %v2902, %v3030
      %v3067 = vsel %vm2995, %v2907, %v3031
      %v3068 = vsel %vm2996, %v2910, %v3032
      %v3069 = vsel %vm2997, %v2915, %v3033
      %v3070 = vsel %vm2998, %v2918, %v3034
      %v3071 = vsel %vm2999, %v2923, %v3035
      %v3072 = vsel %vm3000, %v2926, %v3036
      %v3073 = vsel %vm3001, %v2931, %v3037
      %v3074 = vsel %vm3002, %v2934, %v3038
      %v3075 = vsel %vm3003, %v2939, %v3039
      %v3076 = vsel %vm3004, %v2942, %v3040
      %v3077 = vsel %vm3005, %v2947, %v3041
      %v3078 = vsel %vm3006, %v2950, %v3042
      %v3079 = vsel %vm3007, %v2955, %v3043
      %v3080 = vsel %vm3008, %v2958, %v3044
      %v3081 = vsel %vm3009, %v2963, %v3045
      %v3082 = vsel %vm3010, %v2966, %v3046
      %v3083 = vsel %vm3011, %v2971, %v3047
      %v3084 = vsel %vm3012, %v2974, %v3048
      %3085 = vst.msk [vmem:[%s251] sm:$0xff] %vm1002, %v3049
      %3086 = vst.msk [vmem:[%s251 + $0x8] sm:$0xff] %vm1002, %v3050
      %3087 = vst.msk [vmem:[%s251 + $0x10] sm:$0xff] %vm1002, %v3051
      %3088 = vst.msk [vmem:[%s251 + $0x18] sm:$0xff] %vm1002, %v3052
      %3089 = vst.msk [vmem:[%s251 + $0x20] sm:$0xff] %vm1002, %v3053
      %3090 = vst.msk [vmem:[%s251 + $0x28] sm:$0xff] %vm1002, %v3054
      %3091 = vst.msk [vmem:[%s251 + $0x30] sm:$0xff] %vm1002, %v3055
      %3092 = vst.msk [vmem:[%s251 + $0x38] sm:$0xff] %vm1002, %v3056
      %3093 = vst.msk [vmem:[%s251 + $0x40] sm:$0xff] %vm1002, %v3057
      %3094 = vst.msk [vmem:[%s251 + $0x48] sm:$0xff] %vm1002, %v3058
      %3095 = vst.msk [vmem:[%s251 + $0x50] sm:$0xff] %vm1002, %v3059
      %3096 = vst.msk [vmem:[%s251 + $0x58] sm:$0xff] %vm1002, %v3060
      %3097 = vst.msk [vmem:[%s251 + $0x60] sm:$0xff] %vm1002, %v3061
      %3098 = vst.msk [vmem:[%s251 + $0x68] sm:$0xff] %vm1002, %v3062
      %3099 = vst.msk [vmem:[%s251 + $0x70] sm:$0xff] %vm1002, %v3063
      %3100 = vst.msk [vmem:[%s251 + $0x78] sm:$0xff] %vm1002, %v3064
      %3101 = vst.msk [vmem:[%s251 + $0x80] sm:$0xff] %vm1002, %v3065
      %3102 = vst.msk [vmem:[%s251 + $0x88] sm:$0xff] %vm1002, %v3066
      %3103 = vst.msk [vmem:[%s251 + $0x90] sm:$0xff] %vm1002, %v3067
      %3104 = vst.msk [vmem:[%s251 + $0x98] sm:$0xff] %vm1002, %v3068
      %3105 = vst.msk [vmem:[%s251 + $0xa0] sm:$0xff] %vm1002, %v3069
      %3106 = vst.msk [vmem:[%s251 + $0xa8] sm:$0xff] %vm1002, %v3070
      %3107 = vst.msk [vmem:[%s251 + $0xb0] sm:$0xff] %vm1002, %v3071
      %3108 = vst.msk [vmem:[%s251 + $0xb8] sm:$0xff] %vm1002, %v3072
      %3109 = vst.msk [vmem:[%s251 + $0xc0] sm:$0xff] %vm1002, %v3073
      %3110 = vst.msk [vmem:[%s251 + $0xc8] sm:$0xff] %vm1002, %v3074
      %3111 = vst.msk [vmem:[%s251 + $0xd0] sm:$0xff] %vm1002, %v3075
      %3112 = vst.msk [vmem:[%s251 + $0xd8] sm:$0xff] %vm1002, %v3076
      %3113 = vst.msk [vmem:[%s251 + $0xe0] sm:$0xff] %vm1002, %v3077
      %3114 = vst.msk [vmem:[%s251 + $0xe8] sm:$0xff] %vm1002, %v3078
      %3115 = vst.msk [vmem:[%s251 + $0xf0] sm:$0xff] %vm1002, %v3079
      %3116 = vst.msk [vmem:[%s251 + $0xf8] sm:$0xff] %vm1002, %v3080
      %3117 = vst.msk [vmem:[%s251 + $0x100] sm:$0xff] %vm1002, %v3081
      %3118 = vst.msk [vmem:[%s251 + $0x108] sm:$0xff] %vm1002, %v3082
      %3119 = vst.msk [vmem:[%s251 + $0x110] sm:$0xff] %vm1002, %v3083
      %3120 = vst.msk [vmem:[%s251 + $0x118] sm:$0xff] %vm1002, %v3084
      %p3121 = scmp.lt.s32.totalorder %s17, 1
      %s3122 = scalar_select %p3121, %s17, 1
      %s3123 = smul.addr %s3122, 36
      %s3124 = smul.addr %s3123, 8
      %s3125 = scalar_lea.vmem %s6, %s3124
      // Predicated region
      $region45: #{tpu_custom_call.1} parent=43 // pred_check
        %p3126 = pneg %p166
      $region46: #{tpu_custom_call.1} parent=43 // pred_check_branch
        %3128 = sbr.rel (%p3126) target = $region48
      $region47: #{tpu_custom_call.1} parent=43 // pred_region
        _
      $region48: #{tpu_custom_call.1} parent=43 // pred_fallthru
        _
    $region44: #{tpu_custom_call.1} parent=5 // pred_fallthru
      _
    %p3129 = scmp.le.s32.totalorder 2, %s12
    // Predicated region
    $region49: #{tpu_custom_call.1} parent=5 // pred_check
      %p3130 = pneg %p3129
    $region50: #{tpu_custom_call.1} parent=5 // pred_check_branch
      %3132 = sbr.rel (%p3130) target = $region52
    $region51: #{tpu_custom_call.1} parent=5 // pred_region
      %s3133 = ssub.s32 %s12, 2
      // Predicated region
      $region53: #{tpu_custom_call.1} parent=51 // pred_check
        %p3134 = pneg %p172
      $region54: #{tpu_custom_call.1} parent=51 // pred_check_branch
        %3136 = sbr.rel (%p3134) target = $region56
      $region55: #{tpu_custom_call.1} parent=51 // pred_region
        %p3137 = scmp.lt.s32.totalorder %s18, 1
        %s3138 = scalar_select %p3137, %s18, 1
        %s3139 = smul.addr %s3138, 36
        %s3140 = smul.addr %s3139, 8
        %s3141 = scalar_lea.vmem %s6, %s3140
      $region56: #{tpu_custom_call.1} parent=51 // pred_fallthru
        _
    $region52: #{tpu_custom_call.1} parent=5 // pred_fallthru
      _
  $region6: #{tpu_custom_call.1} parent=0 // loop_footer
    %s16 = sadd.s32 1, %s12
  $region7: #{tpu_custom_call.1} parent=0 // loop_footer_branch
    %11 = sbr.rel target = $region3
  $region8: #{tpu_custom_call.1} parent=0 // loop_exit
    _

</llo_original>
